<compile_context>
chip_gen: v6e
topology: v6e:2x2x1
jax: 0.10.0
libtpu: 0.0.40
codegen_flags: <defaults>
</compile_context>

<pallas_src>
import functools

import jax
import jax.numpy as jnp
from jax.experimental import pallas as pl
from jax.experimental.pallas import tpu as pltpu


def _round_up(x, m):
    return (x + m - 1) // m * m


def _pick_tile(n, candidates=(512, 256, 128, 64, 32, 16, 8)):
    """Largest M-tile that divides n (multiples of 8), else the full n."""
    for t in candidates:
        if n % t == 0:
            return t
    return n


# ---------------------------------------------------------------------------
# Kernel 1: fused conv (im2col matmul) + bias + ReLU + 2x2 max-pool.
# ---------------------------------------------------------------------------
def _conv_pool_kernel(p_ref, w_ref, b_ref, o_ref):
    # p_ref: (4, Kpad, PM) bf16  -- four pool-quadrant im2col slabs, one image
    # w_ref: (OutC, Kpad)  bf16  -- resident conv weights
    # b_ref: (OutC, 1)     f32
    # o_ref: (OutC, PM)    f32   -- pooled ReLU activations, spatial in lanes
    w = w_ref[...]

    def mm(q):
        return jnp.dot(w, p_ref[q], preferred_element_type=jnp.float32)

    # max over the 4 pool positions commutes with (+bias) and ReLU.
    m = jnp.maximum(jnp.maximum(mm(0), mm(1)), jnp.maximum(mm(2), mm(3)))
    m = m + b_ref[...]
    o_ref[...] = jnp.maximum(m, 0.0).astype(o_ref.dtype)


def conv_relu_pool(x, w2d, b2d, kh=5, kw=5):
    """MaxPool2d(2,2)(ReLU(Conv2d(x))) on an NCHW tensor, one pallas_call.

    x   : (N, C, H, W)
    w2d : (OutC, Kpad) bf16, contraction order (c, kh, kw), zero-padded K
    b2d : (OutC, 1) f32
    returns (N, OutC, (H-kh+1)//2, (W-kw+1)//2) f32, NCHW.
    """
    N, C, H, W = x.shape
    OutC, Kpad = w2d.shape
    OH, OW = H - kh + 1, W - kw + 1
    assert OH % 2 == 0 and OW % 2 == 0, "pool expects even conv output"
    POH, POW = OH // 2, OW // 2
    PM = POH * POW
    K = C * kh * kw
    assert Kpad >= K

    # im2col in glue, already grouped by 2x2 pool quadrant (dy, dx).
    cols = []
    for i in range(kh):
        for j in range(kw):
            cols.append(x[:, :, i:i + OH, j:j + OW])            # (N, C, OH, OW)
    pat = jnp.stack(cols, axis=2)                               # (N, C, kh*kw, OH, OW)
    pat = pat.reshape(N, C, kh * kw, POH, 2, POW, 2)
    pat = pat.transpose(0, 4, 6, 1, 2, 3, 5)                    # (N, dy, dx, C, kh*kw, POH, POW)
    pat = pat.reshape(N, 4, K, PM)
    if Kpad > K:
        pat = jnp.pad(pat, ((0, 0), (0, 0), (0, Kpad - K), (0, 0)))
    pat = pat.astype(jnp.bfloat16)

    out = pl.pallas_call(
        _conv_pool_kernel,
        out_shape=jax.ShapeDtypeStruct((N, OutC, PM), jnp.float32),
        grid=(N,),
        in_specs=[
            pl.BlockSpec((None, 4, Kpad, PM), lambda n: (n, 0, 0, 0)),
            pl.BlockSpec((OutC, Kpad), lambda n: (0, 0)),
            pl.BlockSpec((OutC, 1), lambda n: (0, 0)),
        ],
        out_specs=pl.BlockSpec((None, OutC, PM), lambda n: (n, 0, 0)),
        compiler_params=pltpu.CompilerParams(
            dimension_semantics=("parallel",)),
    )(pat, w2d, b2d)
    return out.reshape(N, OutC, POH, POW)


# ---------------------------------------------------------------------------
# Kernel 2: fused fc1 -> ReLU -> fc2 -> ReLU -> fc3 with resident weights.
# ---------------------------------------------------------------------------
def _fc_stack_kernel(x_ref, w1_ref, b1_ref, w2_ref, b2_ref, w3_ref, b3_ref,
                     o_ref):
    h = jnp.dot(x_ref[...], w1_ref[...], preferred_element_type=jnp.float32)
    h = jnp.maximum(h + b1_ref[...], 0.0).astype(jnp.bfloat16)
    h = jnp.dot(h, w2_ref[...], preferred_element_type=jnp.float32)
    h = jnp.maximum(h + b2_ref[...], 0.0).astype(jnp.bfloat16)
    h = jnp.dot(h, w3_ref[...], preferred_element_type=jnp.float32)
    o_ref[...] = (h + b3_ref[...]).astype(o_ref.dtype)


def fc_stack(x, w1, b1, w2, b2, w3, b3):
    """x: (N, F) bf16; w*: (in, out) bf16 pre-transposed; b*: (1, out) f32."""
    N, F = x.shape
    H1, H2, NCp = w1.shape[1], w2.shape[1], w3.shape[1]
    TM = _pick_tile(N)
    const = lambda m: (0, 0)
    return pl.pallas_call(
        _fc_stack_kernel,
        out_shape=jax.ShapeDtypeStruct((N, NCp), jnp.float32),
        grid=(N // TM,),
        in_specs=[
            pl.BlockSpec((TM, F), lambda m: (m, 0)),
            pl.BlockSpec((F, H1), const),
            pl.BlockSpec((1, H1), const),
            pl.BlockSpec((H1, H2), const),
            pl.BlockSpec((1, H2), const),
            pl.BlockSpec((H2, NCp), const),
            pl.BlockSpec((1, NCp), const),
        ],
        out_specs=pl.BlockSpec((TM, NCp), lambda m: (m, 0)),
        compiler_params=pltpu.CompilerParams(
            dimension_semantics=("parallel",)),
    )(x, w1, b1, w2, b2, w3, b3)


# ---------------------------------------------------------------------------
# Net: params in torch layout, one-time repack, forward pass.
# ---------------------------------------------------------------------------
def init_params(key, number_of_classes, input_shape):
    h, w = input_shape
    fh = ((h - 4) // 2 - 4) // 2
    fw = ((w - 4) // 2 - 4) // 2
    fc1_in = 16 * fh * fw
    ks = jax.random.split(key, 5)

    def w_init(k, shape, fan_in):
        return jax.random.normal(k, shape, jnp.float32) / jnp.sqrt(float(fan_in))

    return {
        "conv1_w": w_init(ks[0], (6, 3, 5, 5), 3 * 5 * 5),
        "conv1_b": jnp.zeros((6,), jnp.float32),
        "conv2_w": w_init(ks[1], (16, 6, 5, 5), 6 * 5 * 5),
        "conv2_b": jnp.zeros((16,), jnp.float32),
        "fc1_w": w_init(ks[2], (256, fc1_in), fc1_in),   # torch Linear: (out, in)
        "fc1_b": jnp.zeros((256,), jnp.float32),
        "fc2_w": w_init(ks[3], (128, 256), 256),
        "fc2_b": jnp.zeros((128,), jnp.float32),
        "fc3_w": w_init(ks[4], (number_of_classes, 128), 128),
        "fc3_b": jnp.zeros((number_of_classes,), jnp.float32),
    }


def prepare_params(params, number_of_classes):
    """One-time repack: bf16 operands, pre-transposed FC weights, K padded to
    128-multiples, fc3 output lanes padded to 128."""
    def conv_pack(w):
        outc, c, kh, kw = w.shape
        k = c * kh * kw
        kpad = _round_up(k, 128)
        w2 = w.reshape(outc, k)
        return jnp.pad(w2, ((0, 0), (0, kpad - k))).astype(jnp.bfloat16)

    nc = number_of_classes
    ncp = _round_up(max(nc, 128), 128)
    fc3_w = jnp.pad(params["fc3_w"], ((0, ncp - nc), (0, 0)))
    fc3_b = jnp.pad(params["fc3_b"], (0, ncp - nc))

    return {
        "conv1_w": conv_pack(params["conv1_w"]),
        "conv1_b": params["conv1_b"].reshape(-1, 1).astype(jnp.float32),
        "conv2_w": conv_pack(params["conv2_w"]),
        "conv2_b": params["conv2_b"].reshape(-1, 1).astype(jnp.float32),
        "fc1_w": params["fc1_w"].T.astype(jnp.bfloat16),
        "fc1_b": params["fc1_b"].reshape(1, -1).astype(jnp.float32),
        "fc2_w": params["fc2_w"].T.astype(jnp.bfloat16),
        "fc2_b": params["fc2_b"].reshape(1, -1).astype(jnp.float32),
        "fc3_w": fc3_w.T.astype(jnp.bfloat16),
        "fc3_b": fc3_b.reshape(1, -1).astype(jnp.float32),
    }


def net_forward(params, x, *, num_classes):
    # x: (N, 3, H, W) NCHW, matching PyTorch.
    x = conv_relu_pool(x, params["conv1_w"], params["conv1_b"])   # (N, 6, 14, 14)
    x = conv_relu_pool(x, params["conv2_w"], params["conv2_b"])   # (N, 16, 5, 5)
    x = x.reshape(x.shape[0], -1).astype(jnp.bfloat16)            # torch.flatten(x, 1)
    x = fc_stack(x, params["fc1_w"], params["fc1_b"],
                 params["fc2_w"], params["fc2_b"],
                 params["fc3_w"], params["fc3_b"])                # (N, 128-padded) f32
    return x[:, :num_classes]


if __name__ == "__main__":
    number_of_classes = 10
    input_shape = (32, 32)          # -> 16 * 5 * 5 = 400 flatten features
    batch = 2

    key = jax.random.PRNGKey(0)
    pkey, xkey = jax.random.split(key)
    params = init_params(pkey, number_of_classes, input_shape)
    kparams = prepare_params(params, number_of_classes)
    x = jax.random.normal(xkey, (batch, 3, *input_shape), jnp.float32)

    fwd = jax.jit(functools.partial(net_forward, num_classes=number_of_classes))
    out = jax.block_until_ready(fwd(kparams, x))
    assert out.shape == (batch, number_of_classes), out.shape
    assert out.dtype == jnp.float32
    print("KERNEL_OK")
</pallas_src>

<mosaic_0001>
module attributes {stable_mosaic.version = 11 : i64} {
  func.func @_conv_pool_kernel(%arg0: i32, %arg1: memref<1x4x128x196xbf16, #tpu.memory_space<vmem>>, %arg2: memref<6x128xbf16, #tpu.memory_space<vmem>>, %arg3: memref<6x1xf32, #tpu.memory_space<vmem>>, %arg4: memref<1x6x196xf32, #tpu.memory_space<vmem>>) attributes {dimension_semantics = [#tpu.dimension_semantics<parallel>], iteration_bounds = array<i64: 2>, scalar_prefetch = 0 : i64, scratch_operands = 0 : i64, tpu.core_type = #tpu.core_type<tc>, window_params = [{transform_indices = @transform_0, window_bounds = array<i64: 1, 4, 128, 196>}, {pipeline_mode = #tpu.pipeline_mode<synchronous>, transform_indices = @transform_1, window_bounds = array<i64: 6, 128>}, {pipeline_mode = #tpu.pipeline_mode<synchronous>, transform_indices = @transform_2, window_bounds = array<i64: 6, 1>}, {transform_indices = @transform_3, window_bounds = array<i64: 1, 6, 196>}]} {
    %c0 = arith.constant 0 : index
    %c0_0 = arith.constant 0 : index
    %0 = vector.load %arg2[%c0, %c0_0] : memref<6x128xbf16, #tpu.memory_space<vmem>>, vector<6x128xbf16>
    %c0_1 = arith.constant 0 : index
    %c0_2 = arith.constant 0 : index
    %c0_3 = arith.constant 0 : index
    %c0_4 = arith.constant 0 : index
    %1 = vector.load %arg1[%c0_1, %c0_2, %c0_3, %c0_4] : memref<1x4x128x196xbf16, #tpu.memory_space<vmem>>, vector<1x1x128x196xbf16>
    %2 = vector.shape_cast %1 : vector<1x1x128x196xbf16> to vector<128x196xbf16>
    %cst = arith.constant dense<0.000000e+00> : vector<6x196xf32>
    %3 = tpu.matmul %0, %2, %cst {dimension_numbers = #tpu.dot_dimension_numbers<[1], [0], [0], [1], [0, 0, 1, 1], [], []>} : vector<6x128xbf16>, vector<128x196xbf16>, vector<6x196xf32> -> vector<6x196xf32>
    %c0_5 = arith.constant 0 : index
    %c1 = arith.constant 1 : index
    %c0_6 = arith.constant 0 : index
    %c0_7 = arith.constant 0 : index
    %4 = vector.load %arg1[%c0_5, %c1, %c0_6, %c0_7] : memref<1x4x128x196xbf16, #tpu.memory_space<vmem>>, vector<1x1x128x196xbf16>
    %5 = vector.shape_cast %4 : vector<1x1x128x196xbf16> to vector<128x196xbf16>
    %cst_8 = arith.constant dense<0.000000e+00> : vector<6x196xf32>
    %6 = tpu.matmul %0, %5, %cst_8 {dimension_numbers = #tpu.dot_dimension_numbers<[1], [0], [0], [1], [0, 0, 1, 1], [], []>} : vector<6x128xbf16>, vector<128x196xbf16>, vector<6x196xf32> -> vector<6x196xf32>
    %7 = arith.maximumf %3, %6 : vector<6x196xf32>
    %c0_9 = arith.constant 0 : index
    %c2 = arith.constant 2 : index
    %c0_10 = arith.constant 0 : index
    %c0_11 = arith.constant 0 : index
    %8 = vector.load %arg1[%c0_9, %c2, %c0_10, %c0_11] : memref<1x4x128x196xbf16, #tpu.memory_space<vmem>>, vector<1x1x128x196xbf16>
    %9 = vector.shape_cast %8 : vector<1x1x128x196xbf16> to vector<128x196xbf16>
    %cst_12 = arith.constant dense<0.000000e+00> : vector<6x196xf32>
    %10 = tpu.matmul %0, %9, %cst_12 {dimension_numbers = #tpu.dot_dimension_numbers<[1], [0], [0], [1], [0, 0, 1, 1], [], []>} : vector<6x128xbf16>, vector<128x196xbf16>, vector<6x196xf32> -> vector<6x196xf32>
    %c0_13 = arith.constant 0 : index
    %c3 = arith.constant 3 : index
    %c0_14 = arith.constant 0 : index
    %c0_15 = arith.constant 0 : index
    %11 = vector.load %arg1[%c0_13, %c3, %c0_14, %c0_15] : memref<1x4x128x196xbf16, #tpu.memory_space<vmem>>, vector<1x1x128x196xbf16>
    %12 = vector.shape_cast %11 : vector<1x1x128x196xbf16> to vector<128x196xbf16>
    %cst_16 = arith.constant dense<0.000000e+00> : vector<6x196xf32>
    %13 = tpu.matmul %0, %12, %cst_16 {dimension_numbers = #tpu.dot_dimension_numbers<[1], [0], [0], [1], [0, 0, 1, 1], [], []>} : vector<6x128xbf16>, vector<128x196xbf16>, vector<6x196xf32> -> vector<6x196xf32>
    %14 = arith.maximumf %10, %13 : vector<6x196xf32>
    %15 = arith.maximumf %7, %14 : vector<6x196xf32>
    %c0_17 = arith.constant 0 : index
    %c0_18 = arith.constant 0 : index
    %16 = vector.load %arg3[%c0_17, %c0_18] : memref<6x1xf32, #tpu.memory_space<vmem>>, vector<6x1xf32>
    %17 = vector.broadcast %16 : vector<6x1xf32> to vector<6x196xf32>
    %18 = arith.addf %15, %17 : vector<6x196xf32>
    %cst_19 = arith.constant 0.000000e+00 : f32
    %19 = vector.broadcast %cst_19 : f32 to vector<6x196xf32>
    %20 = arith.maximumf %18, %19 : vector<6x196xf32>
    %c0_20 = arith.constant 0 : index
    %c0_21 = arith.constant 0 : index
    %c0_22 = arith.constant 0 : index
    %21 = vector.load %arg4[%c0_20, %c0_21, %c0_22] : memref<1x6x196xf32, #tpu.memory_space<vmem>>, vector<1x6x196xf32>
    %22 = vector.shape_cast %21 : vector<1x6x196xf32> to vector<6x196xf32>
    %23 = vector.shape_cast %20 : vector<6x196xf32> to vector<1x6x196xf32>
    tpu.vector_store %arg4[%c0_20, %c0_21, %c0_22], %23 {strides = array<i32>} : memref<1x6x196xf32, #tpu.memory_space<vmem>>, vector<1x6x196xf32>,
    return
  }
  func.func @transform_0(%arg0: i32) -> (i32, i32, i32, i32) {
    %c0_i32 = arith.constant 0 : i32
    %c0_i32_0 = arith.constant 0 : i32
    %c0_i32_1 = arith.constant 0 : i32
    %c0_i32_2 = arith.constant 0 : i32
    return %arg0, %c0_i32, %c0_i32_0, %c0_i32_1 : i32, i32, i32, i32
  }
  func.func @transform_1(%arg0: i32) -> (i32, i32) {
    %c0_i32 = arith.constant 0 : i32
    %c0_i32_0 = arith.constant 0 : i32
    %c0_i32_1 = arith.constant 0 : i32
    return %c0_i32, %c0_i32_0 : i32, i32
  }
  func.func @transform_2(%arg0: i32) -> (i32, i32) {
    %c0_i32 = arith.constant 0 : i32
    %c0_i32_0 = arith.constant 0 : i32
    %c0_i32_1 = arith.constant 0 : i32
    return %c0_i32, %c0_i32_0 : i32, i32
  }
  func.func @transform_3(%arg0: i32) -> (i32, i32, i32) {
    %c0_i32 = arith.constant 0 : i32
    %c0_i32_0 = arith.constant 0 : i32
    %c0_i32_1 = arith.constant 0 : i32
    return %arg0, %c0_i32, %c0_i32_0 : i32, i32, i32
  }
}

module attributes {stable_mosaic.version = 11 : i64} {
  func.func @_conv_pool_kernel(%arg0: i32, %arg1: memref<1x4x256x25xbf16, #tpu.memory_space<vmem>>, %arg2: memref<16x256xbf16, #tpu.memory_space<vmem>>, %arg3: memref<16x1xf32, #tpu.memory_space<vmem>>, %arg4: memref<1x16x25xf32, #tpu.memory_space<vmem>>) attributes {dimension_semantics = [#tpu.dimension_semantics<parallel>], iteration_bounds = array<i64: 2>, scalar_prefetch = 0 : i64, scratch_operands = 0 : i64, tpu.core_type = #tpu.core_type<tc>, window_params = [{transform_indices = @transform_0, window_bounds = array<i64: 1, 4, 256, 25>}, {pipeline_mode = #tpu.pipeline_mode<synchronous>, transform_indices = @transform_1, window_bounds = array<i64: 16, 256>}, {pipeline_mode = #tpu.pipeline_mode<synchronous>, transform_indices = @transform_2, window_bounds = array<i64: 16, 1>}, {transform_indices = @transform_3, window_bounds = array<i64: 1, 16, 25>}]} {
    %c0 = arith.constant 0 : index
    %c0_0 = arith.constant 0 : index
    %0 = vector.load %arg2[%c0, %c0_0] : memref<16x256xbf16, #tpu.memory_space<vmem>>, vector<16x256xbf16>
    %c0_1 = arith.constant 0 : index
    %c0_2 = arith.constant 0 : index
    %c0_3 = arith.constant 0 : index
    %c0_4 = arith.constant 0 : index
    %1 = vector.load %arg1[%c0_1, %c0_2, %c0_3, %c0_4] : memref<1x4x256x25xbf16, #tpu.memory_space<vmem>>, vector<1x1x256x25xbf16>
    %2 = vector.shape_cast %1 : vector<1x1x256x25xbf16> to vector<256x25xbf16>
    %cst = arith.constant dense<0.000000e+00> : vector<16x25xf32>
    %3 = tpu.matmul %0, %2, %cst {dimension_numbers = #tpu.dot_dimension_numbers<[1], [0], [0], [1], [0, 0, 1, 1], [], []>} : vector<16x256xbf16>, vector<256x25xbf16>, vector<16x25xf32> -> vector<16x25xf32>
    %c0_5 = arith.constant 0 : index
    %c1 = arith.constant 1 : index
    %c0_6 = arith.constant 0 : index
    %c0_7 = arith.constant 0 : index
    %4 = vector.load %arg1[%c0_5, %c1, %c0_6, %c0_7] : memref<1x4x256x25xbf16, #tpu.memory_space<vmem>>, vector<1x1x256x25xbf16>
    %5 = vector.shape_cast %4 : vector<1x1x256x25xbf16> to vector<256x25xbf16>
    %cst_8 = arith.constant dense<0.000000e+00> : vector<16x25xf32>
    %6 = tpu.matmul %0, %5, %cst_8 {dimension_numbers = #tpu.dot_dimension_numbers<[1], [0], [0], [1], [0, 0, 1, 1], [], []>} : vector<16x256xbf16>, vector<256x25xbf16>, vector<16x25xf32> -> vector<16x25xf32>
    %7 = arith.maximumf %3, %6 : vector<16x25xf32>
    %c0_9 = arith.constant 0 : index
    %c2 = arith.constant 2 : index
    %c0_10 = arith.constant 0 : index
    %c0_11 = arith.constant 0 : index
    %8 = vector.load %arg1[%c0_9, %c2, %c0_10, %c0_11] : memref<1x4x256x25xbf16, #tpu.memory_space<vmem>>, vector<1x1x256x25xbf16>
    %9 = vector.shape_cast %8 : vector<1x1x256x25xbf16> to vector<256x25xbf16>
    %cst_12 = arith.constant dense<0.000000e+00> : vector<16x25xf32>
    %10 = tpu.matmul %0, %9, %cst_12 {dimension_numbers = #tpu.dot_dimension_numbers<[1], [0], [0], [1], [0, 0, 1, 1], [], []>} : vector<16x256xbf16>, vector<256x25xbf16>, vector<16x25xf32> -> vector<16x25xf32>
    %c0_13 = arith.constant 0 : index
    %c3 = arith.constant 3 : index
    %c0_14 = arith.constant 0 : index
    %c0_15 = arith.constant 0 : index
    %11 = vector.load %arg1[%c0_13, %c3, %c0_14, %c0_15] : memref<1x4x256x25xbf16, #tpu.memory_space<vmem>>, vector<1x1x256x25xbf16>
    %12 = vector.shape_cast %11 : vector<1x1x256x25xbf16> to vector<256x25xbf16>
    %cst_16 = arith.constant dense<0.000000e+00> : vector<16x25xf32>
    %13 = tpu.matmul %0, %12, %cst_16 {dimension_numbers = #tpu.dot_dimension_numbers<[1], [0], [0], [1], [0, 0, 1, 1], [], []>} : vector<16x256xbf16>, vector<256x25xbf16>, vector<16x25xf32> -> vector<16x25xf32>
    %14 = arith.maximumf %10, %13 : vector<16x25xf32>
    %15 = arith.maximumf %7, %14 : vector<16x25xf32>
    %c0_17 = arith.constant 0 : index
    %c0_18 = arith.constant 0 : index
    %16 = vector.load %arg3[%c0_17, %c0_18] : memref<16x1xf32, #tpu.memory_space<vmem>>, vector<16x1xf32>
    %17 = vector.broadcast %16 : vector<16x1xf32> to vector<16x25xf32>
    %18 = arith.addf %15, %17 : vector<16x25xf32>
    %cst_19 = arith.constant 0.000000e+00 : f32
    %19 = vector.broadcast %cst_19 : f32 to vector<16x25xf32>
    %20 = arith.maximumf %18, %19 : vector<16x25xf32>
    %c0_20 = arith.constant 0 : index
    %c0_21 = arith.constant 0 : index
    %c0_22 = arith.constant 0 : index
    %21 = vector.load %arg4[%c0_20, %c0_21, %c0_22] : memref<1x16x25xf32, #tpu.memory_space<vmem>>, vector<1x16x25xf32>
    %22 = vector.shape_cast %21 : vector<1x16x25xf32> to vector<16x25xf32>
    %23 = vector.shape_cast %20 : vector<16x25xf32> to vector<1x16x25xf32>
    tpu.vector_store %arg4[%c0_20, %c0_21, %c0_22], %23 {strides = array<i32>} : memref<1x16x25xf32, #tpu.memory_space<vmem>>, vector<1x16x25xf32>,
    return
  }
  func.func @transform_0(%arg0: i32) -> (i32, i32, i32, i32) {
    %c0_i32 = arith.constant 0 : i32
    %c0_i32_0 = arith.constant 0 : i32
    %c0_i32_1 = arith.constant 0 : i32
    %c0_i32_2 = arith.constant 0 : i32
    return %arg0, %c0_i32, %c0_i32_0, %c0_i32_1 : i32, i32, i32, i32
  }
  func.func @transform_1(%arg0: i32) -> (i32, i32) {
    %c0_i32 = arith.constant 0 : i32
    %c0_i32_0 = arith.constant 0 : i32
    %c0_i32_1 = arith.constant 0 : i32
    return %c0_i32, %c0_i32_0 : i32, i32
  }
  func.func @transform_2(%arg0: i32) -> (i32, i32) {
    %c0_i32 = arith.constant 0 : i32
    %c0_i32_0 = arith.constant 0 : i32
    %c0_i32_1 = arith.constant 0 : i32
    return %c0_i32, %c0_i32_0 : i32, i32
  }
  func.func @transform_3(%arg0: i32) -> (i32, i32, i32) {
    %c0_i32 = arith.constant 0 : i32
    %c0_i32_0 = arith.constant 0 : i32
    %c0_i32_1 = arith.constant 0 : i32
    return %arg0, %c0_i32, %c0_i32_0 : i32, i32, i32
  }
}

module attributes {stable_mosaic.version = 11 : i64} {
  func.func @_fc_stack_kernel(%arg0: i32, %arg1: memref<2x400xbf16, #tpu.memory_space<vmem>>, %arg2: memref<400x256xbf16, #tpu.memory_space<vmem>>, %arg3: memref<1x256xf32, #tpu.memory_space<vmem>>, %arg4: memref<256x128xbf16, #tpu.memory_space<vmem>>, %arg5: memref<1x128xf32, #tpu.memory_space<vmem>>, %arg6: memref<128x128xbf16, #tpu.memory_space<vmem>>, %arg7: memref<1x128xf32, #tpu.memory_space<vmem>>, %arg8: memref<2x128xf32, #tpu.memory_space<vmem>>) attributes {dimension_semantics = [#tpu.dimension_semantics<parallel>], iteration_bounds = array<i64: 1>, scalar_prefetch = 0 : i64, scratch_operands = 0 : i64, tpu.core_type = #tpu.core_type<tc>, window_params = [{transform_indices = @transform_0, window_bounds = array<i64: 2, 400>}, {pipeline_mode = #tpu.pipeline_mode<synchronous>, transform_indices = @transform_1, window_bounds = array<i64: 400, 256>}, {pipeline_mode = #tpu.pipeline_mode<synchronous>, transform_indices = @transform_2, window_bounds = array<i64: 1, 256>}, {pipeline_mode = #tpu.pipeline_mode<synchronous>, transform_indices = @transform_3, window_bounds = array<i64: 256, 128>}, {pipeline_mode = #tpu.pipeline_mode<synchronous>, transform_indices = @transform_4, window_bounds = array<i64: 1, 128>}, {pipeline_mode = #tpu.pipeline_mode<synchronous>, transform_indices = @transform_5, window_bounds = array<i64: 128, 128>}, {pipeline_mode = #tpu.pipeline_mode<synchronous>, transform_indices = @transform_6, window_bounds = array<i64: 1, 128>}, {transform_indices = @transform_7, window_bounds = array<i64: 2, 128>}]} {
    %c0 = arith.constant 0 : index
    %c0_0 = arith.constant 0 : index
    %0 = vector.load %arg1[%c0, %c0_0] : memref<2x400xbf16, #tpu.memory_space<vmem>>, vector<2x400xbf16>
    %c0_1 = arith.constant 0 : index
    %c0_2 = arith.constant 0 : index
    %1 = vector.load %arg2[%c0_1, %c0_2] : memref<400x256xbf16, #tpu.memory_space<vmem>>, vector<400x256xbf16>
    %cst = arith.constant dense<0.000000e+00> : vector<2x256xf32>
    %2 = tpu.matmul %0, %1, %cst {dimension_numbers = #tpu.dot_dimension_numbers<[1], [0], [0], [1], [0, 0, 1, 1], [], []>} : vector<2x400xbf16>, vector<400x256xbf16>, vector<2x256xf32> -> vector<2x256xf32>
    %c0_3 = arith.constant 0 : index
    %c0_4 = arith.constant 0 : index
    %3 = vector.load %arg3[%c0_3, %c0_4] : memref<1x256xf32, #tpu.memory_space<vmem>>, vector<1x256xf32>
    %4 = vector.broadcast %3 : vector<1x256xf32> to vector<2x256xf32>
    %5 = arith.addf %2, %4 : vector<2x256xf32>
    %cst_5 = arith.constant 0.000000e+00 : f32
    %6 = vector.broadcast %cst_5 : f32 to vector<2x256xf32>
    %7 = arith.maximumf %5, %6 : vector<2x256xf32>
    %8 = arith.truncf %7 : vector<2x256xf32> to vector<2x256xbf16>
    %c0_6 = arith.constant 0 : index
    %c0_7 = arith.constant 0 : index
    %9 = vector.load %arg4[%c0_6, %c0_7] : memref<256x128xbf16, #tpu.memory_space<vmem>>, vector<256x128xbf16>
    %cst_8 = arith.constant dense<0.000000e+00> : vector<2x128xf32>
    %10 = tpu.matmul %8, %9, %cst_8 {dimension_numbers = #tpu.dot_dimension_numbers<[1], [0], [0], [1], [0, 0, 1, 1], [], []>} : vector<2x256xbf16>, vector<256x128xbf16>, vector<2x128xf32> -> vector<2x128xf32>
    %c0_9 = arith.constant 0 : index
    %c0_10 = arith.constant 0 : index
    %11 = vector.load %arg5[%c0_9, %c0_10] : memref<1x128xf32, #tpu.memory_space<vmem>>, vector<1x128xf32>
    %12 = vector.broadcast %11 : vector<1x128xf32> to vector<2x128xf32>
    %13 = arith.addf %10, %12 : vector<2x128xf32>
    %cst_11 = arith.constant 0.000000e+00 : f32
    %14 = vector.broadcast %cst_11 : f32 to vector<2x128xf32>
    %15 = arith.maximumf %13, %14 : vector<2x128xf32>
    %16 = arith.truncf %15 : vector<2x128xf32> to vector<2x128xbf16>
    %c0_12 = arith.constant 0 : index
    %c0_13 = arith.constant 0 : index
    %17 = vector.load %arg6[%c0_12, %c0_13] : memref<128x128xbf16, #tpu.memory_space<vmem>>, vector<128x128xbf16>
    %cst_14 = arith.constant dense<0.000000e+00> : vector<2x128xf32>
    %18 = tpu.matmul %16, %17, %cst_14 {dimension_numbers = #tpu.dot_dimension_numbers<[1], [0], [0], [1], [0, 0, 1, 1], [], []>} : vector<2x128xbf16>, vector<128x128xbf16>, vector<2x128xf32> -> vector<2x128xf32>
    %c0_15 = arith.constant 0 : index
    %c0_16 = arith.constant 0 : index
    %19 = vector.load %arg7[%c0_15, %c0_16] : memref<1x128xf32, #tpu.memory_space<vmem>>, vector<1x128xf32>
    %20 = vector.broadcast %19 : vector<1x128xf32> to vector<2x128xf32>
    %21 = arith.addf %18, %20 : vector<2x128xf32>
    %c0_17 = arith.constant 0 : index
    %c0_18 = arith.constant 0 : index
    %22 = vector.load %arg8[%c0_17, %c0_18] : memref<2x128xf32, #tpu.memory_space<vmem>>, vector<2x128xf32>
    tpu.vector_store %arg8[%c0_17, %c0_18], %21 {strides = array<i32>} : memref<2x128xf32, #tpu.memory_space<vmem>>, vector<2x128xf32>,
    return
  }
  func.func @transform_0(%arg0: i32) -> (i32, i32) {
    %c0_i32 = arith.constant 0 : i32
    %c0_i32_0 = arith.constant 0 : i32
    return %arg0, %c0_i32 : i32, i32
  }
  func.func @transform_1(%arg0: i32) -> (i32, i32) {
    %c0_i32 = arith.constant 0 : i32
    %c0_i32_0 = arith.constant 0 : i32
    %c0_i32_1 = arith.constant 0 : i32
    return %c0_i32, %c0_i32_0 : i32, i32
  }
  func.func @transform_2(%arg0: i32) -> (i32, i32) {
    %c0_i32 = arith.constant 0 : i32
    %c0_i32_0 = arith.constant 0 : i32
    %c0_i32_1 = arith.constant 0 : i32
    return %c0_i32, %c0_i32_0 : i32, i32
  }
  func.func @transform_3(%arg0: i32) -> (i32, i32) {
    %c0_i32 = arith.constant 0 : i32
    %c0_i32_0 = arith.constant 0 : i32
    %c0_i32_1 = arith.constant 0 : i32
    return %c0_i32, %c0_i32_0 : i32, i32
  }
  func.func @transform_4(%arg0: i32) -> (i32, i32) {
    %c0_i32 = arith.constant 0 : i32
    %c0_i32_0 = arith.constant 0 : i32
    %c0_i32_1 = arith.constant 0 : i32
    return %c0_i32, %c0_i32_0 : i32, i32
  }
  func.func @transform_5(%arg0: i32) -> (i32, i32) {
    %c0_i32 = arith.constant 0 : i32
    %c0_i32_0 = arith.constant 0 : i32
    %c0_i32_1 = arith.constant 0 : i32
    return %c0_i32, %c0_i32_0 : i32, i32
  }
  func.func @transform_6(%arg0: i32) -> (i32, i32) {
    %c0_i32 = arith.constant 0 : i32
    %c0_i32_0 = arith.constant 0 : i32
    %c0_i32_1 = arith.constant 0 : i32
    return %c0_i32, %c0_i32_0 : i32, i32
  }
  func.func @transform_7(%arg0: i32) -> (i32, i32) {
    %c0_i32 = arith.constant 0 : i32
    %c0_i32_0 = arith.constant 0 : i32
    return %arg0, %c0_i32 : i32, i32
  }
}

</mosaic_0001>

<llo_original>
// kernel: net_forward.3
$region0: #{net_forward.3}
  #allocation0 [shape = 'u32[]', space=smem, size = 0x4, offset = 0x4, fixed_abs, tag = 'smem constant byte address 0x4 - core index']
  #allocation1 [shape = 'u32[144,128]{1,0:T(1,128)}', space=vmem, size = 0x12000, scoped, tag = 'internal scratch']
  %s0 = inlined_call_operand.vmem [shape: bf16[2,4,128,196], index: 0, kind: input, shape index: {}]
  %s1 = inlined_call_operand.vmem [shape: bf16[6,128], index: 1, kind: input, shape index: {}]
  %s2 = inlined_call_operand.vmem [shape: f32[6,1], index: 2, kind: input, shape index: {}]
  %s3 = inlined_call_operand.vmem [shape: f32[2,6,196], index: 3, kind: output, shape index: {}]
  %s4 = sld [smem:[#allocation0]]
  $region45: #{net_forward.3} parent=0
    _
  %s6 = ssub.s32 1, %s4
  %s7 = scalar_select 0, %s6, %s4
  loop: start=0, step=1, limit=4
  $region2: #{net_forward.3} parent=0 // loop_pre_header
    _
  $region3: #{net_forward.3} parent=0 // loop_header
    %s9 = sphi 0, %s13
    %p10 = scmp.ge.s32.totalorder %s9, 4
    %s19 = sphi 0, %s21
    %s22 = sphi 0, %s19
    %s23 = sphi 0, %s22
    %s39 = sphi 0, %s23
    %s43 = sphi 0, %s43
    %s45 = sphi 0, %s43
    %s46 = sphi 0, %s45
    %s60 = sphi 0, %s46
    %s64 = sphi 0, %s64
    %s66 = sphi 0, %s64
    %s67 = sphi 0, %s66
    %s81 = sphi 0, %s67
    %s87 = sphi 0, %s89
    %s90 = sphi 0, %s87
    %s91 = sphi 0, %s90
    %s107 = sphi 0, %s91
  $region4: #{net_forward.3} parent=0 // loop_header_branch
    %12 = sbr.rel (%p10) target = $region8
  $region5: #{net_forward.3} parent=0 // loop_body
    %s14 = ssub.s32 %s9, 1
    %s15 = ssub.s32 %s9, 2
    %s16 = sadd.s32 %s9, 1
    %s17 = ssub.s32 %s9, %s16
    %p18 = scmp.eq.s32.totalorder %s17, 0
    %s20 = sadd.s32 %s19, 1
    %s21 = scalar_select %p18, %s19, %s20
    %p24 = pneg %p18
    %p25 = scmp.eq.s32.totalorder %s9, 1
    %p26 = por %p24, %p25
    %p27 = scmp.ne.s32.totalorder %s19, %s22
    %p28 = scmp.eq.s32.totalorder %s9, 0
    %p29 = por %p27, %p28
    %p30 = scmp.ne.s32.totalorder %s19, %s22
    %p31 = scmp.eq.s32.totalorder %s14, 1
    %p32 = por %p30, %p31
    %p33 = scmp.ne.s32.totalorder %s22, %s23
    %p34 = scmp.eq.s32.totalorder %s14, 0
    %p35 = por %p33, %p34
    %p36 = scmp.ne.s32.totalorder %s22, %s23
    %p37 = scmp.eq.s32.totalorder %s15, 1
    %p38 = por %p36, %p37
    %p40 = scmp.ne.s32.totalorder %s23, %s39
    %p41 = scmp.eq.s32.totalorder %s15, 0
    %p42 = por %p40, %p41
    %s44 = sadd.s32 %s43, 1
    %p47 = scmp.eq.s32.totalorder %s9, 1
    %p48 = scmp.ne.s32.totalorder %s43, %s45
    %p49 = scmp.eq.s32.totalorder %s9, 0
    %p50 = por %p48, %p49
    %p51 = scmp.ne.s32.totalorder %s43, %s45
    %p52 = scmp.eq.s32.totalorder %s14, 1
    %p53 = por %p51, %p52
    %p54 = scmp.ne.s32.totalorder %s45, %s46
    %p55 = scmp.eq.s32.totalorder %s14, 0
    %p56 = por %p54, %p55
    %p57 = scmp.ne.s32.totalorder %s45, %s46
    %p58 = scmp.eq.s32.totalorder %s15, 1
    %p59 = por %p57, %p58
    %p61 = scmp.ne.s32.totalorder %s46, %s60
    %p62 = scmp.eq.s32.totalorder %s15, 0
    %p63 = por %p61, %p62
    %s65 = sadd.s32 %s64, 1
    %p68 = scmp.eq.s32.totalorder %s9, 1
    %p69 = scmp.ne.s32.totalorder %s64, %s66
    %p70 = scmp.eq.s32.totalorder %s9, 0
    %p71 = por %p69, %p70
    %p72 = scmp.ne.s32.totalorder %s64, %s66
    %p73 = scmp.eq.s32.totalorder %s14, 1
    %p74 = por %p72, %p73
    %p75 = scmp.ne.s32.totalorder %s66, %s67
    %p76 = scmp.eq.s32.totalorder %s14, 0
    %p77 = por %p75, %p76
    %p78 = scmp.ne.s32.totalorder %s66, %s67
    %p79 = scmp.eq.s32.totalorder %s15, 1
    %p80 = por %p78, %p79
    %p82 = scmp.ne.s32.totalorder %s67, %s81
    %p83 = scmp.eq.s32.totalorder %s15, 0
    %p84 = por %p82, %p83
    %s85 = ssub.s32 %s9, %s16
    %p86 = scmp.eq.s32.totalorder %s85, 0
    %s88 = sadd.s32 %s87, 1
    %s89 = scalar_select %p86, %s87, %s88
    %p92 = pneg %p86
    %p93 = scmp.eq.s32.totalorder %s9, 1
    %p94 = por %p92, %p93
    %p95 = scmp.ne.s32.totalorder %s87, %s90
    %p96 = scmp.eq.s32.totalorder %s9, 0
    %p97 = por %p95, %p96
    %p98 = scmp.ne.s32.totalorder %s87, %s90
    %p99 = scmp.eq.s32.totalorder %s14, 1
    %p100 = por %p98, %p99
    %p101 = scmp.ne.s32.totalorder %s90, %s91
    %p102 = scmp.eq.s32.totalorder %s14, 0
    %p103 = por %p101, %p102
    %p104 = scmp.ne.s32.totalorder %s90, %s91
    %p105 = scmp.eq.s32.totalorder %s15, 1
    %p106 = por %p104, %p105
    %p108 = scmp.ne.s32.totalorder %s91, %s107
    %p109 = scmp.eq.s32.totalorder %s15, 0
    %p110 = por %p108, %p109
    %p111 = scmp.le.s32.totalorder 1, %s9
    %p112 = scmp.lt.s32.totalorder %s9, 3
    %p113 = pnand %p111, %p112
    %p114 = pneg %p113
    // Predicated region
    $region9: #{net_forward.3} parent=5 // pred_check
      _
    $region10: #{net_forward.3} parent=5 // pred_check_branch
      %116 = sbr.rel (%p113) target = $region12
    $region11: #{net_forward.3} parent=5 // pred_region
      %s117 = ssub.s32 %s9, 1
      // Predicated region
      $region13: #{net_forward.3} parent=11 // pred_check
        %p118 = pneg %p56
      $region14: #{net_forward.3} parent=11 // pred_check_branch
        %120 = sbr.rel (%p118) target = $region16
      $region15: #{net_forward.3} parent=11 // pred_region
        _
      $region16: #{net_forward.3} parent=11 // pred_fallthru
        _
      // Predicated region
      $region17: #{net_forward.3} parent=11 // pred_check
        %p121 = pneg %p77
      $region18: #{net_forward.3} parent=11 // pred_check_branch
        %123 = sbr.rel (%p121) target = $region20
      $region19: #{net_forward.3} parent=11 // pred_region
        _
      $region20: #{net_forward.3} parent=11 // pred_fallthru
        _
    $region12: #{net_forward.3} parent=5 // pred_fallthru
      _
    %p124 = scmp.lt.s32.totalorder %s9, 2
    // Predicated region
    $region21: #{net_forward.3} parent=5 // pred_check
      %p125 = pneg %p124
    $region22: #{net_forward.3} parent=5 // pred_check_branch
      %127 = sbr.rel (%p125) target = $region24
    $region23: #{net_forward.3} parent=5 // pred_region
      // Predicated region
      $region25: #{net_forward.3} parent=23 // pred_check
        %p128 = pneg %p29
      $region26: #{net_forward.3} parent=23 // pred_check_branch
        %130 = sbr.rel (%p128) target = $region28
      $region27: #{net_forward.3} parent=23 // pred_region
        %p131 = scmp.lt.s32.totalorder %s9, 1
        %s132 = scalar_select %p131, %s9, 1
        %s133 = smul.addr %s132, 128
        %s134 = smul.addr %s133, 4
        %s135 = scalar_lea.vmem %s0, %s134
      $region28: #{net_forward.3} parent=23 // pred_fallthru
        _
    $region24: #{net_forward.3} parent=5 // pred_fallthru
      _
    %p136 = scmp.le.s32.totalorder 1, %s9
    %p137 = scmp.lt.s32.totalorder %s9, 3
    %p138 = pnand %p136, %p137
    %p139 = pneg %p138
    // Predicated region
    $region29: #{net_forward.3} parent=5 // pred_check
      _
    $region30: #{net_forward.3} parent=5 // pred_check_branch
      %141 = sbr.rel (%p138) target = $region32
    $region31: #{net_forward.3} parent=5 // pred_region
      %s142 = ssub.s32 %s9, 1
      %p143 = scmp.lt.s32.totalorder %s14, 1
      %s144 = scalar_select %p143, %s14, 1
      %s145 = smul.addr %s144, 128
      %s146 = smul.addr %s145, 4
      %s147 = scalar_lea.vmem %s0, %s146
      %p148 = pneg %p35
      %p149 = pneg %p32
      %p150 = pneg %p56
      %p151 = pneg %p53
      %p152 = pneg %p77
      %p153 = pneg %p74
      %p154 = pneg %p103
      %p155 = pneg %p100
      %p156 = scmp.lt.s32.totalorder %s14, 1
      %s157 = scalar_select %p156, %s14, 1
      %s158 = smul.addr %s157, 2
      %s159 = smul.addr %s158, 8
      %s160 = scalar_lea.vmem %s3, %s159
      %p161 = scmp.lt.s32.totalorder %s14, 1
      %s162 = scalar_select %p161, %s14, 1
      %s163 = smul.addr %s162, 128
      %s164 = smul.addr %s163, 4
      %s165 = scalar_lea.vmem %s0, %s164
      %p166 = scmp.lt.s32.totalorder %s14, 1
      %s167 = scalar_select %p166, %s14, 1
      %s168 = smul.addr %s167, 2
      %s169 = smul.addr %s168, 8
      %s170 = scalar_lea.vmem %s3, %s169
      %v172 = vld [vmem:[%s1] sm:$0x7]
      %v173 = vld [vmem:[%s165] sm:$0xff]
      %v174 = vld [vmem:[%s165 + $0x8] sm:$0xff]
      %v175 = vld [vmem:[%s165 + $0x10] sm:$0xff]
      %v176 = vld [vmem:[%s165 + $0x18] sm:$0xff]
      %v177 = vld [vmem:[%s165 + $0x20] sm:$0xff]
      %v178 = vld [vmem:[%s165 + $0x28] sm:$0xff]
      %v179 = vld [vmem:[%s165 + $0x30] sm:$0xff]
      %v180 = vld [vmem:[%s165 + $0x38] sm:$0xff]
      %v181 = vld [vmem:[%s165 + $0x40] sm:$0xff]
      %v182 = vld [vmem:[%s165 + $0x48] sm:$0xff]
      %v183 = vld [vmem:[%s165 + $0x50] sm:$0xff]
      %v184 = vld [vmem:[%s165 + $0x58] sm:$0xff]
      %v185 = vld [vmem:[%s165 + $0x60] sm:$0xff]
      %v186 = vld [vmem:[%s165 + $0x68] sm:$0xff]
      %v187 = vld [vmem:[%s165 + $0x70] sm:$0xff]
      %v188 = vld [vmem:[%s165 + $0x78] sm:$0xff]
      %v205 = vunpack.c.l.b16 %v173
      %v206 = vunpack.c.h.b16 %v173
      %v207 = vunpack.c.l.b16 %v174
      %v208 = vunpack.c.h.b16 %v174
      %v209 = vunpack.c.l.b16 %v175
      %v210 = vunpack.c.h.b16 %v175
      %v211 = vunpack.c.l.b16 %v176
      %v212 = vunpack.c.h.b16 %v176
      %v213 = vunpack.c.l.b16 %v177
      %v214 = vunpack.c.h.b16 %v177
      %v215 = vunpack.c.l.b16 %v178
      %v216 = vunpack.c.h.b16 %v178
      %v217 = vunpack.c.l.b16 %v179
      %v218 = vunpack.c.h.b16 %v179
      %v219 = vunpack.c.l.b16 %v180
      %v220 = vunpack.c.h.b16 %v180
      %v221 = vunpack.c.l.b16 %v181
      %v222 = vunpack.c.h.b16 %v181
      %v223 = vunpack.c.l.b16 %v182
      %v224 = vunpack.c.h.b16 %v182
      %v225 = vunpack.c.l.b16 %v183
      %v226 = vunpack.c.h.b16 %v183
      %v227 = vunpack.c.l.b16 %v184
      %v228 = vunpack.c.h.b16 %v184
      %v229 = vunpack.c.l.b16 %v185
      %v230 = vunpack.c.h.b16 %v185
      %v231 = vunpack.c.l.b16 %v186
      %v232 = vunpack.c.h.b16 %v186
      %v233 = vunpack.c.l.b16 %v187
      %v234 = vunpack.c.h.b16 %v187
      %v235 = vunpack.c.l.b16 %v188
      %v236 = vunpack.c.h.b16 %v188
      %v237 = vpack.c.b16 %v207, %v205
      %v238 = vpack.c.b16 %v208, %v206
      %v239 = vpack.c.b16 %v211, %v209
      %v240 = vpack.c.b16 %v212, %v210
      %v241 = vpack.c.b16 %v215, %v213
      %v242 = vpack.c.b16 %v216, %v214
      %v243 = vpack.c.b16 %v219, %v217
      %v244 = vpack.c.b16 %v220, %v218
      %v245 = vpack.c.b16 %v223, %v221
      %v246 = vpack.c.b16 %v224, %v222
      %v247 = vpack.c.b16 %v227, %v225
      %v248 = vpack.c.b16 %v228, %v226
      %v249 = vpack.c.b16 %v231, %v229
      %v250 = vpack.c.b16 %v232, %v230
      %v251 = vpack.c.b16 %v235, %v233
      %v252 = vpack.c.b16 %v236, %v234
      %269 = vmatprep.subr.bf16.mxu0 %v252
      %270 = vmatpush1.bf16.msra.mxu0 %v251
      %271 = vmatprep.subr.bf16.mxu0 %v250
      %272 = vmatpush1.bf16.msra.mxu0 %v249
      %273 = vmatprep.subr.bf16.mxu0 %v248
      %274 = vmatpush1.bf16.msra.mxu0 %v247
      %275 = vmatprep.subr.bf16.mxu0 %v246
      %276 = vmatpush1.bf16.msra.mxu0 %v245
      %277 = vmatprep.subr.bf16.mxu0 %v244
      %278 = vmatpush1.bf16.msra.mxu0 %v243
      %279 = vmatprep.subr.bf16.mxu0 %v242
      %280 = vmatpush1.bf16.msra.mxu0 %v241
      %281 = vmatprep.subr.bf16.mxu0 %v240
      %282 = vmatpush1.bf16.msra.mxu0 %v239
      %283 = vmatprep.subr.bf16.mxu0 %v238
      %284 = vmatpush1.bf16.msra.mxu0 %v237
      %285 = vmatprep.subr.bf16.mxu0 0
      %286 = vmatpush2.bf16.msra.mxu0 0
      %287 = vmatprep.subr.bf16.mxu0 0
      %288 = vmatpush2.bf16.msra.mxu0 0
      %289 = vmatprep.subr.bf16.mxu0 0
      %290 = vmatpush2.bf16.msra.mxu0 0
      %291 = vmatprep.subr.bf16.mxu0 0
      %292 = vmatpush2.bf16.msra.mxu0 0
      %293 = vmatprep.subr.bf16.mxu0 0
      %294 = vmatpush2.bf16.msra.mxu0 0
      %295 = vmatprep.subr.bf16.mxu0 0
      %296 = vmatpush2.bf16.msra.mxu0 0
      %297 = vmatprep.subr.bf16.mxu0 0
      %298 = vmatpush2.bf16.msra.mxu0 0
      %299 = vmatprep.subr.bf16.mxu0 0
      %300 = vmatpush2.bf16.msra.mxu0 0
      %301 = vmatprep.mubr.bf16.mxu0 0
      %302 = vmatmul.mubr.bf16.gmra.mxu0 %v172
      %v303 = vpop.f32.mrf.mxu0
      %v304 = vadd.f32 0.0, %v303
      %v305 = vpop.f32.mrf.mxu0
      %v306 = vadd.f32 0.0, %v305
      %v307 = vpop.f32.mrf.mxu0
      %v308 = vpop.f32.mrf.mxu0
      %309 = vdwg.mxu0
      %s310 = scalar_lea.vmem %s165, 128
      %v311 = vld [vmem:[%s310] sm:$0xff]
      %v312 = vld [vmem:[%s310 + $0x8] sm:$0xff]
      %v313 = vld [vmem:[%s310 + $0x10] sm:$0xff]
      %v314 = vld [vmem:[%s310 + $0x18] sm:$0xff]
      %v315 = vld [vmem:[%s310 + $0x20] sm:$0xff]
      %v316 = vld [vmem:[%s310 + $0x28] sm:$0xff]
      %v317 = vld [vmem:[%s310 + $0x30] sm:$0xff]
      %v318 = vld [vmem:[%s310 + $0x38] sm:$0xff]
      %v319 = vld [vmem:[%s310 + $0x40] sm:$0xff]
      %v320 = vld [vmem:[%s310 + $0x48] sm:$0xff]
      %v321 = vld [vmem:[%s310 + $0x50] sm:$0xff]
      %v322 = vld [vmem:[%s310 + $0x58] sm:$0xff]
      %v323 = vld [vmem:[%s310 + $0x60] sm:$0xff]
      %v324 = vld [vmem:[%s310 + $0x68] sm:$0xff]
      %v325 = vld [vmem:[%s310 + $0x70] sm:$0xff]
      %v326 = vld [vmem:[%s310 + $0x78] sm:$0xff]
      %v343 = vunpack.c.l.b16 %v311
      %v344 = vunpack.c.h.b16 %v311
      %v345 = vunpack.c.l.b16 %v312
      %v346 = vunpack.c.h.b16 %v312
      %v347 = vunpack.c.l.b16 %v313
      %v348 = vunpack.c.h.b16 %v313
      %v349 = vunpack.c.l.b16 %v314
      %v350 = vunpack.c.h.b16 %v314
      %v351 = vunpack.c.l.b16 %v315
      %v352 = vunpack.c.h.b16 %v315
      %v353 = vunpack.c.l.b16 %v316
      %v354 = vunpack.c.h.b16 %v316
      %v355 = vunpack.c.l.b16 %v317
      %v356 = vunpack.c.h.b16 %v317
      %v357 = vunpack.c.l.b16 %v318
      %v358 = vunpack.c.h.b16 %v318
      %v359 = vunpack.c.l.b16 %v319
      %v360 = vunpack.c.h.b16 %v319
      %v361 = vunpack.c.l.b16 %v320
      %v362 = vunpack.c.h.b16 %v320
      %v363 = vunpack.c.l.b16 %v321
      %v364 = vunpack.c.h.b16 %v321
      %v365 = vunpack.c.l.b16 %v322
      %v366 = vunpack.c.h.b16 %v322
      %v367 = vunpack.c.l.b16 %v323
      %v368 = vunpack.c.h.b16 %v323
      %v369 = vunpack.c.l.b16 %v324
      %v370 = vunpack.c.h.b16 %v324
      %v371 = vunpack.c.l.b16 %v325
      %v372 = vunpack.c.h.b16 %v325
      %v373 = vunpack.c.l.b16 %v326
      %v374 = vunpack.c.h.b16 %v326
      %v375 = vpack.c.b16 %v345, %v343
      %v376 = vpack.c.b16 %v346, %v344
      %v377 = vpack.c.b16 %v349, %v347
      %v378 = vpack.c.b16 %v350, %v348
      %v379 = vpack.c.b16 %v353, %v351
      %v380 = vpack.c.b16 %v354, %v352
      %v381 = vpack.c.b16 %v357, %v355
      %v382 = vpack.c.b16 %v358, %v356
      %v383 = vpack.c.b16 %v361, %v359
      %v384 = vpack.c.b16 %v362, %v360
      %v385 = vpack.c.b16 %v365, %v363
      %v386 = vpack.c.b16 %v366, %v364
      %v387 = vpack.c.b16 %v369, %v367
      %v388 = vpack.c.b16 %v370, %v368
      %v389 = vpack.c.b16 %v373, %v371
      %v390 = vpack.c.b16 %v374, %v372
      %407 = vmatprep.subr.bf16.mxu0 %v390
      %408 = vmatpush1.bf16.msra.mxu0 %v389
      %409 = vmatprep.subr.bf16.mxu0 %v388
      %410 = vmatpush1.bf16.msra.mxu0 %v387
      %411 = vmatprep.subr.bf16.mxu0 %v386
      %412 = vmatpush1.bf16.msra.mxu0 %v385
      %413 = vmatprep.subr.bf16.mxu0 %v384
      %414 = vmatpush1.bf16.msra.mxu0 %v383
      %415 = vmatprep.subr.bf16.mxu0 %v382
      %416 = vmatpush1.bf16.msra.mxu0 %v381
      %417 = vmatprep.subr.bf16.mxu0 %v380
      %418 = vmatpush1.bf16.msra.mxu0 %v379
      %419 = vmatprep.subr.bf16.mxu0 %v378
      %420 = vmatpush1.bf16.msra.mxu0 %v377
      %421 = vmatprep.subr.bf16.mxu0 %v376
      %422 = vmatpush1.bf16.msra.mxu0 %v375
      %423 = vmatprep.subr.bf16.mxu0 0
      %424 = vmatpush2.bf16.msra.mxu0 0
      %425 = vmatprep.subr.bf16.mxu0 0
      %426 = vmatpush2.bf16.msra.mxu0 0
      %427 = vmatprep.subr.bf16.mxu0 0
      %428 = vmatpush2.bf16.msra.mxu0 0
      %429 = vmatprep.subr.bf16.mxu0 0
      %430 = vmatpush2.bf16.msra.mxu0 0
      %431 = vmatprep.subr.bf16.mxu0 0
      %432 = vmatpush2.bf16.msra.mxu0 0
      %433 = vmatprep.subr.bf16.mxu0 0
      %434 = vmatpush2.bf16.msra.mxu0 0
      %435 = vmatprep.subr.bf16.mxu0 0
      %436 = vmatpush2.bf16.msra.mxu0 0
      %437 = vmatprep.subr.bf16.mxu0 0
      %438 = vmatpush2.bf16.msra.mxu0 0
      %439 = vmatprep.mubr.bf16.mxu0 0
      %440 = vmatmul.mubr.bf16.gmra.mxu0 %v172
      %v441 = vpop.f32.mrf.mxu0
      %v442 = vadd.f32 0.0, %v441
      %v443 = vpop.f32.mrf.mxu0
      %v444 = vadd.f32 0.0, %v443
      %v445 = vpop.f32.mrf.mxu0
      %v446 = vpop.f32.mrf.mxu0
      %447 = vdwg.mxu0
      %v448 = vmax.f32 %v304, %v442
      %v449 = vmax.f32 %v306, %v444
      %s450 = scalar_lea.vmem %s165, 256
      %v451 = vld [vmem:[%s450] sm:$0xff]
      %v452 = vld [vmem:[%s450 + $0x8] sm:$0xff]
      %v453 = vld [vmem:[%s450 + $0x10] sm:$0xff]
      %v454 = vld [vmem:[%s450 + $0x18] sm:$0xff]
      %v455 = vld [vmem:[%s450 + $0x20] sm:$0xff]
      %v456 = vld [vmem:[%s450 + $0x28] sm:$0xff]
      %v457 = vld [vmem:[%s450 + $0x30] sm:$0xff]
      %v458 = vld [vmem:[%s450 + $0x38] sm:$0xff]
      %v459 = vld [vmem:[%s450 + $0x40] sm:$0xff]
      %v460 = vld [vmem:[%s450 + $0x48] sm:$0xff]
      %v461 = vld [vmem:[%s450 + $0x50] sm:$0xff]
      %v462 = vld [vmem:[%s450 + $0x58] sm:$0xff]
      %v463 = vld [vmem:[%s450 + $0x60] sm:$0xff]
      %v464 = vld [vmem:[%s450 + $0x68] sm:$0xff]
      %v465 = vld [vmem:[%s450 + $0x70] sm:$0xff]
      %v466 = vld [vmem:[%s450 + $0x78] sm:$0xff]
      %v483 = vunpack.c.l.b16 %v451
      %v484 = vunpack.c.h.b16 %v451
      %v485 = vunpack.c.l.b16 %v452
      %v486 = vunpack.c.h.b16 %v452
      %v487 = vunpack.c.l.b16 %v453
      %v488 = vunpack.c.h.b16 %v453
      %v489 = vunpack.c.l.b16 %v454
      %v490 = vunpack.c.h.b16 %v454
      %v491 = vunpack.c.l.b16 %v455
      %v492 = vunpack.c.h.b16 %v455
      %v493 = vunpack.c.l.b16 %v456
      %v494 = vunpack.c.h.b16 %v456
      %v495 = vunpack.c.l.b16 %v457
      %v496 = vunpack.c.h.b16 %v457
      %v497 = vunpack.c.l.b16 %v458
      %v498 = vunpack.c.h.b16 %v458
      %v499 = vunpack.c.l.b16 %v459
      %v500 = vunpack.c.h.b16 %v459
      %v501 = vunpack.c.l.b16 %v460
      %v502 = vunpack.c.h.b16 %v460
      %v503 = vunpack.c.l.b16 %v461
      %v504 = vunpack.c.h.b16 %v461
      %v505 = vunpack.c.l.b16 %v462
      %v506 = vunpack.c.h.b16 %v462
      %v507 = vunpack.c.l.b16 %v463
      %v508 = vunpack.c.h.b16 %v463
      %v509 = vunpack.c.l.b16 %v464
      %v510 = vunpack.c.h.b16 %v464
      %v511 = vunpack.c.l.b16 %v465
      %v512 = vunpack.c.h.b16 %v465
      %v513 = vunpack.c.l.b16 %v466
      %v514 = vunpack.c.h.b16 %v466
      %v515 = vpack.c.b16 %v485, %v483
      %v516 = vpack.c.b16 %v486, %v484
      %v517 = vpack.c.b16 %v489, %v487
      %v518 = vpack.c.b16 %v490, %v488
      %v519 = vpack.c.b16 %v493, %v491
      %v520 = vpack.c.b16 %v494, %v492
      %v521 = vpack.c.b16 %v497, %v495
      %v522 = vpack.c.b16 %v498, %v496
      %v523 = vpack.c.b16 %v501, %v499
      %v524 = vpack.c.b16 %v502, %v500
      %v525 = vpack.c.b16 %v505, %v503
      %v526 = vpack.c.b16 %v506, %v504
      %v527 = vpack.c.b16 %v509, %v507
      %v528 = vpack.c.b16 %v510, %v508
      %v529 = vpack.c.b16 %v513, %v511
      %v530 = vpack.c.b16 %v514, %v512
      %547 = vmatprep.subr.bf16.mxu0 %v530
      %548 = vmatpush1.bf16.msra.mxu0 %v529
      %549 = vmatprep.subr.bf16.mxu0 %v528
      %550 = vmatpush1.bf16.msra.mxu0 %v527
      %551 = vmatprep.subr.bf16.mxu0 %v526
      %552 = vmatpush1.bf16.msra.mxu0 %v525
      %553 = vmatprep.subr.bf16.mxu0 %v524
      %554 = vmatpush1.bf16.msra.mxu0 %v523
      %555 = vmatprep.subr.bf16.mxu0 %v522
      %556 = vmatpush1.bf16.msra.mxu0 %v521
      %557 = vmatprep.subr.bf16.mxu0 %v520
      %558 = vmatpush1.bf16.msra.mxu0 %v519
      %559 = vmatprep.subr.bf16.mxu0 %v518
      %560 = vmatpush1.bf16.msra.mxu0 %v517
      %561 = vmatprep.subr.bf16.mxu0 %v516
      %562 = vmatpush1.bf16.msra.mxu0 %v515
      %563 = vmatprep.subr.bf16.mxu0 0
      %564 = vmatpush2.bf16.msra.mxu0 0
      %565 = vmatprep.subr.bf16.mxu0 0
      %566 = vmatpush2.bf16.msra.mxu0 0
      %567 = vmatprep.subr.bf16.mxu0 0
      %568 = vmatpush2.bf16.msra.mxu0 0
      %569 = vmatprep.subr.bf16.mxu0 0
      %570 = vmatpush2.bf16.msra.mxu0 0
      %571 = vmatprep.subr.bf16.mxu0 0
      %572 = vmatpush2.bf16.msra.mxu0 0
      %573 = vmatprep.subr.bf16.mxu0 0
      %574 = vmatpush2.bf16.msra.mxu0 0
      %575 = vmatprep.subr.bf16.mxu0 0
      %576 = vmatpush2.bf16.msra.mxu0 0
      %577 = vmatprep.subr.bf16.mxu0 0
      %578 = vmatpush2.bf16.msra.mxu0 0
      %579 = vmatprep.mubr.bf16.mxu0 0
      %580 = vmatmul.mubr.bf16.gmra.mxu0 %v172
      %v581 = vpop.f32.mrf.mxu0
      %v582 = vadd.f32 0.0, %v581
      %v583 = vpop.f32.mrf.mxu0
      %v584 = vadd.f32 0.0, %v583
      %v585 = vpop.f32.mrf.mxu0
      %v586 = vpop.f32.mrf.mxu0
      %587 = vdwg.mxu0
      %s588 = scalar_lea.vmem %s165, 384
      %v589 = vld [vmem:[%s588] sm:$0xff]
      %v590 = vld [vmem:[%s588 + $0x8] sm:$0xff]
      %v591 = vld [vmem:[%s588 + $0x10] sm:$0xff]
      %v592 = vld [vmem:[%s588 + $0x18] sm:$0xff]
      %v593 = vld [vmem:[%s588 + $0x20] sm:$0xff]
      %v594 = vld [vmem:[%s588 + $0x28] sm:$0xff]
      %v595 = vld [vmem:[%s588 + $0x30] sm:$0xff]
      %v596 = vld [vmem:[%s588 + $0x38] sm:$0xff]
      %v597 = vld [vmem:[%s588 + $0x40] sm:$0xff]
      %v598 = vld [vmem:[%s588 + $0x48] sm:$0xff]
      %v599 = vld [vmem:[%s588 + $0x50] sm:$0xff]
      %v600 = vld [vmem:[%s588 + $0x58] sm:$0xff]
      %v601 = vld [vmem:[%s588 + $0x60] sm:$0xff]
      %v602 = vld [vmem:[%s588 + $0x68] sm:$0xff]
      %v603 = vld [vmem:[%s588 + $0x70] sm:$0xff]
      %v604 = vld [vmem:[%s588 + $0x78] sm:$0xff]
      %v621 = vunpack.c.l.b16 %v589
      %v622 = vunpack.c.h.b16 %v589
      %v623 = vunpack.c.l.b16 %v590
      %v624 = vunpack.c.h.b16 %v590
      %v625 = vunpack.c.l.b16 %v591
      %v626 = vunpack.c.h.b16 %v591
      %v627 = vunpack.c.l.b16 %v592
      %v628 = vunpack.c.h.b16 %v592
      %v629 = vunpack.c.l.b16 %v593
      %v630 = vunpack.c.h.b16 %v593
      %v631 = vunpack.c.l.b16 %v594
      %v632 = vunpack.c.h.b16 %v594
      %v633 = vunpack.c.l.b16 %v595
      %v634 = vunpack.c.h.b16 %v595
      %v635 = vunpack.c.l.b16 %v596
      %v636 = vunpack.c.h.b16 %v596
      %v637 = vunpack.c.l.b16 %v597
      %v638 = vunpack.c.h.b16 %v597
      %v639 = vunpack.c.l.b16 %v598
      %v640 = vunpack.c.h.b16 %v598
      %v641 = vunpack.c.l.b16 %v599
      %v642 = vunpack.c.h.b16 %v599
      %v643 = vunpack.c.l.b16 %v600
      %v644 = vunpack.c.h.b16 %v600
      %v645 = vunpack.c.l.b16 %v601
      %v646 = vunpack.c.h.b16 %v601
      %v647 = vunpack.c.l.b16 %v602
      %v648 = vunpack.c.h.b16 %v602
      %v649 = vunpack.c.l.b16 %v603
      %v650 = vunpack.c.h.b16 %v603
      %v651 = vunpack.c.l.b16 %v604
      %v652 = vunpack.c.h.b16 %v604
      %v653 = vpack.c.b16 %v623, %v621
      %v654 = vpack.c.b16 %v624, %v622
      %v655 = vpack.c.b16 %v627, %v625
      %v656 = vpack.c.b16 %v628, %v626
      %v657 = vpack.c.b16 %v631, %v629
      %v658 = vpack.c.b16 %v632, %v630
      %v659 = vpack.c.b16 %v635, %v633
      %v660 = vpack.c.b16 %v636, %v634
      %v661 = vpack.c.b16 %v639, %v637
      %v662 = vpack.c.b16 %v640, %v638
      %v663 = vpack.c.b16 %v643, %v641
      %v664 = vpack.c.b16 %v644, %v642
      %v665 = vpack.c.b16 %v647, %v645
      %v666 = vpack.c.b16 %v648, %v646
      %v667 = vpack.c.b16 %v651, %v649
      %v668 = vpack.c.b16 %v652, %v650
      %685 = vmatprep.subr.bf16.mxu0 %v668
      %686 = vmatpush1.bf16.msra.mxu0 %v667
      %687 = vmatprep.subr.bf16.mxu0 %v666
      %688 = vmatpush1.bf16.msra.mxu0 %v665
      %689 = vmatprep.subr.bf16.mxu0 %v664
      %690 = vmatpush1.bf16.msra.mxu0 %v663
      %691 = vmatprep.subr.bf16.mxu0 %v662
      %692 = vmatpush1.bf16.msra.mxu0 %v661
      %693 = vmatprep.subr.bf16.mxu0 %v660
      %694 = vmatpush1.bf16.msra.mxu0 %v659
      %695 = vmatprep.subr.bf16.mxu0 %v658
      %696 = vmatpush1.bf16.msra.mxu0 %v657
      %697 = vmatprep.subr.bf16.mxu0 %v656
      %698 = vmatpush1.bf16.msra.mxu0 %v655
      %699 = vmatprep.subr.bf16.mxu0 %v654
      %700 = vmatpush1.bf16.msra.mxu0 %v653
      %701 = vmatprep.subr.bf16.mxu0 0
      %702 = vmatpush2.bf16.msra.mxu0 0
      %703 = vmatprep.subr.bf16.mxu0 0
      %704 = vmatpush2.bf16.msra.mxu0 0
      %705 = vmatprep.subr.bf16.mxu0 0
      %706 = vmatpush2.bf16.msra.mxu0 0
      %707 = vmatprep.subr.bf16.mxu0 0
      %708 = vmatpush2.bf16.msra.mxu0 0
      %709 = vmatprep.subr.bf16.mxu0 0
      %710 = vmatpush2.bf16.msra.mxu0 0
      %711 = vmatprep.subr.bf16.mxu0 0
      %712 = vmatpush2.bf16.msra.mxu0 0
      %713 = vmatprep.subr.bf16.mxu0 0
      %714 = vmatpush2.bf16.msra.mxu0 0
      %715 = vmatprep.subr.bf16.mxu0 0
      %716 = vmatpush2.bf16.msra.mxu0 0
      %717 = vmatprep.mubr.bf16.mxu0 0
      %718 = vmatmul.mubr.bf16.gmra.mxu0 %v172
      %v719 = vpop.f32.mrf.mxu0
      %v720 = vadd.f32 0.0, %v719
      %v721 = vpop.f32.mrf.mxu0
      %v722 = vadd.f32 0.0, %v721
      %v723 = vpop.f32.mrf.mxu0
      %v724 = vpop.f32.mrf.mxu0
      %725 = vdwg.mxu0
      %v726 = vmax.f32 %v582, %v720
      %v727 = vmax.f32 %v584, %v722
      %v728 = vmax.f32 %v448, %v726
      %v729 = vmax.f32 %v449, %v727
      %v730 = vld [vmem:[%s2] sm:$0x3f]
      %732 = vset.pattern.permute.xlu0 0
      %733 = vperm.xlu0 %732, %v730
      %v734 = vpop.permute.xlu0 %733
      %v736 = vadd.f32 %v728, %v734
      %v737 = vadd.f32 %v729, %v734
      %v738 = vmax.f32 %v736, 0.0
      %v739 = vmax.f32 %v737, 0.0
      %740 = vst [vmem:[%s170] sm:$0x3f] %v738
      %vm741 = vcmask 553984
      %742 = vst.msk [vmem:[%s170 + $0x8] sm:$0x3f] %vm741, %v739
      %p743 = scmp.lt.s32.totalorder %s14, 1
      %s744 = scalar_select %p743, %s14, 1
      %s745 = smul.addr %s744, 2
      %s746 = smul.addr %s745, 8
      %s747 = scalar_lea.vmem %s3, %s746
      // Predicated region
      $region33: #{net_forward.3} parent=31 // pred_check
        %p748 = pneg %p100
      $region34: #{net_forward.3} parent=31 // pred_check_branch
        %750 = sbr.rel (%p748) target = $region36
      $region35: #{net_forward.3} parent=31 // pred_region
        _
      $region36: #{net_forward.3} parent=31 // pred_fallthru
        _
    $region32: #{net_forward.3} parent=5 // pred_fallthru
      _
    %p751 = scmp.le.s32.totalorder 2, %s9
    // Predicated region
    $region37: #{net_forward.3} parent=5 // pred_check
      %p752 = pneg %p751
    $region38: #{net_forward.3} parent=5 // pred_check_branch
      %754 = sbr.rel (%p752) target = $region40
    $region39: #{net_forward.3} parent=5 // pred_region
      %s755 = ssub.s32 %s9, 2
      // Predicated region
      $region41: #{net_forward.3} parent=39 // pred_check
        %p756 = pneg %p106
      $region42: #{net_forward.3} parent=39 // pred_check_branch
        %758 = sbr.rel (%p756) target = $region44
      $region43: #{net_forward.3} parent=39 // pred_region
        %p759 = scmp.lt.s32.totalorder %s15, 1
        %s760 = scalar_select %p759, %s15, 1
        %s761 = smul.addr %s760, 2
        %s762 = smul.addr %s761, 8
        %s763 = scalar_lea.vmem %s3, %s762
      $region44: #{net_forward.3} parent=39 // pred_fallthru
        _
    $region40: #{net_forward.3} parent=5 // pred_fallthru
      _
  $region6: #{net_forward.3} parent=0 // loop_footer
    %s13 = sadd.s32 1, %s9
  $region7: #{net_forward.3} parent=0 // loop_footer_branch
    %8 = sbr.rel target = $region3
  $region8: #{net_forward.3} parent=0 // loop_exit
    _

// kernel: net_forward.4
$region0: #{net_forward.4}
  #allocation0 [shape = 'u32[]', space=smem, size = 0x4, offset = 0x4, fixed_abs, tag = 'smem constant byte address 0x4 - core index']
  #allocation1 [shape = 'u32[144,128]{1,0:T(1,128)}', space=vmem, size = 0x12000, scoped, tag = 'internal scratch']
  %s0 = inlined_call_operand.vmem [shape: bf16[2,4,256,25], index: 0, kind: input, shape index: {}]
  %s1 = inlined_call_operand.vmem [shape: bf16[16,256], index: 1, kind: input, shape index: {}]
  %s2 = inlined_call_operand.vmem [shape: f32[16,1], index: 2, kind: input, shape index: {}]
  %s3 = inlined_call_operand.vmem [shape: f32[2,16,25], index: 3, kind: output, shape index: {}]
  %s4 = sld [smem:[#allocation0]]
  $region45: #{net_forward.4} parent=0
    _
  %s6 = ssub.s32 1, %s4
  %s7 = scalar_select 0, %s6, %s4
  loop: start=0, step=1, limit=4
  $region2: #{net_forward.4} parent=0 // loop_pre_header
    _
  $region3: #{net_forward.4} parent=0 // loop_header
    %s9 = sphi 0, %s13
    %p10 = scmp.ge.s32.totalorder %s9, 4
    %s19 = sphi 0, %s21
    %s22 = sphi 0, %s19
    %s23 = sphi 0, %s22
    %s39 = sphi 0, %s23
    %s43 = sphi 0, %s43
    %s45 = sphi 0, %s43
    %s46 = sphi 0, %s45
    %s60 = sphi 0, %s46
    %s64 = sphi 0, %s64
    %s66 = sphi 0, %s64
    %s67 = sphi 0, %s66
    %s81 = sphi 0, %s67
    %s87 = sphi 0, %s89
    %s90 = sphi 0, %s87
    %s91 = sphi 0, %s90
    %s107 = sphi 0, %s91
  $region4: #{net_forward.4} parent=0 // loop_header_branch
    %12 = sbr.rel (%p10) target = $region8
  $region5: #{net_forward.4} parent=0 // loop_body
    %s14 = ssub.s32 %s9, 1
    %s15 = ssub.s32 %s9, 2
    %s16 = sadd.s32 %s9, 1
    %s17 = ssub.s32 %s9, %s16
    %p18 = scmp.eq.s32.totalorder %s17, 0
    %s20 = sadd.s32 %s19, 1
    %s21 = scalar_select %p18, %s19, %s20
    %p24 = pneg %p18
    %p25 = scmp.eq.s32.totalorder %s9, 1
    %p26 = por %p24, %p25
    %p27 = scmp.ne.s32.totalorder %s19, %s22
    %p28 = scmp.eq.s32.totalorder %s9, 0
    %p29 = por %p27, %p28
    %p30 = scmp.ne.s32.totalorder %s19, %s22
    %p31 = scmp.eq.s32.totalorder %s14, 1
    %p32 = por %p30, %p31
    %p33 = scmp.ne.s32.totalorder %s22, %s23
    %p34 = scmp.eq.s32.totalorder %s14, 0
    %p35 = por %p33, %p34
    %p36 = scmp.ne.s32.totalorder %s22, %s23
    %p37 = scmp.eq.s32.totalorder %s15, 1
    %p38 = por %p36, %p37
    %p40 = scmp.ne.s32.totalorder %s23, %s39
    %p41 = scmp.eq.s32.totalorder %s15, 0
    %p42 = por %p40, %p41
    %s44 = sadd.s32 %s43, 1
    %p47 = scmp.eq.s32.totalorder %s9, 1
    %p48 = scmp.ne.s32.totalorder %s43, %s45
    %p49 = scmp.eq.s32.totalorder %s9, 0
    %p50 = por %p48, %p49
    %p51 = scmp.ne.s32.totalorder %s43, %s45
    %p52 = scmp.eq.s32.totalorder %s14, 1
    %p53 = por %p51, %p52
    %p54 = scmp.ne.s32.totalorder %s45, %s46
    %p55 = scmp.eq.s32.totalorder %s14, 0
    %p56 = por %p54, %p55
    %p57 = scmp.ne.s32.totalorder %s45, %s46
    %p58 = scmp.eq.s32.totalorder %s15, 1
    %p59 = por %p57, %p58
    %p61 = scmp.ne.s32.totalorder %s46, %s60
    %p62 = scmp.eq.s32.totalorder %s15, 0
    %p63 = por %p61, %p62
    %s65 = sadd.s32 %s64, 1
    %p68 = scmp.eq.s32.totalorder %s9, 1
    %p69 = scmp.ne.s32.totalorder %s64, %s66
    %p70 = scmp.eq.s32.totalorder %s9, 0
    %p71 = por %p69, %p70
    %p72 = scmp.ne.s32.totalorder %s64, %s66
    %p73 = scmp.eq.s32.totalorder %s14, 1
    %p74 = por %p72, %p73
    %p75 = scmp.ne.s32.totalorder %s66, %s67
    %p76 = scmp.eq.s32.totalorder %s14, 0
    %p77 = por %p75, %p76
    %p78 = scmp.ne.s32.totalorder %s66, %s67
    %p79 = scmp.eq.s32.totalorder %s15, 1
    %p80 = por %p78, %p79
    %p82 = scmp.ne.s32.totalorder %s67, %s81
    %p83 = scmp.eq.s32.totalorder %s15, 0
    %p84 = por %p82, %p83
    %s85 = ssub.s32 %s9, %s16
    %p86 = scmp.eq.s32.totalorder %s85, 0
    %s88 = sadd.s32 %s87, 1
    %s89 = scalar_select %p86, %s87, %s88
    %p92 = pneg %p86
    %p93 = scmp.eq.s32.totalorder %s9, 1
    %p94 = por %p92, %p93
    %p95 = scmp.ne.s32.totalorder %s87, %s90
    %p96 = scmp.eq.s32.totalorder %s9, 0
    %p97 = por %p95, %p96
    %p98 = scmp.ne.s32.totalorder %s87, %s90
    %p99 = scmp.eq.s32.totalorder %s14, 1
    %p100 = por %p98, %p99
    %p101 = scmp.ne.s32.totalorder %s90, %s91
    %p102 = scmp.eq.s32.totalorder %s14, 0
    %p103 = por %p101, %p102
    %p104 = scmp.ne.s32.totalorder %s90, %s91
    %p105 = scmp.eq.s32.totalorder %s15, 1
    %p106 = por %p104, %p105
    %p108 = scmp.ne.s32.totalorder %s91, %s107
    %p109 = scmp.eq.s32.totalorder %s15, 0
    %p110 = por %p108, %p109
    %p111 = scmp.le.s32.totalorder 1, %s9
    %p112 = scmp.lt.s32.totalorder %s9, 3
    %p113 = pnand %p111, %p112
    %p114 = pneg %p113
    // Predicated region
    $region9: #{net_forward.4} parent=5 // pred_check
      _
    $region10: #{net_forward.4} parent=5 // pred_check_branch
      %116 = sbr.rel (%p113) target = $region12
    $region11: #{net_forward.4} parent=5 // pred_region
      %s117 = ssub.s32 %s9, 1
      // Predicated region
      $region13: #{net_forward.4} parent=11 // pred_check
        %p118 = pneg %p56
      $region14: #{net_forward.4} parent=11 // pred_check_branch
        %120 = sbr.rel (%p118) target = $region16
      $region15: #{net_forward.4} parent=11 // pred_region
        _
      $region16: #{net_forward.4} parent=11 // pred_fallthru
        _
      // Predicated region
      $region17: #{net_forward.4} parent=11 // pred_check
        %p121 = pneg %p77
      $region18: #{net_forward.4} parent=11 // pred_check_branch
        %123 = sbr.rel (%p121) target = $region20
      $region19: #{net_forward.4} parent=11 // pred_region
        _
      $region20: #{net_forward.4} parent=11 // pred_fallthru
        _
    $region12: #{net_forward.4} parent=5 // pred_fallthru
      _
    %p124 = scmp.lt.s32.totalorder %s9, 2
    // Predicated region
    $region21: #{net_forward.4} parent=5 // pred_check
      %p125 = pneg %p124
    $region22: #{net_forward.4} parent=5 // pred_check_branch
      %127 = sbr.rel (%p125) target = $region24
    $region23: #{net_forward.4} parent=5 // pred_region
      // Predicated region
      $region25: #{net_forward.4} parent=23 // pred_check
        %p128 = pneg %p29
      $region26: #{net_forward.4} parent=23 // pred_check_branch
        %130 = sbr.rel (%p128) target = $region28
      $region27: #{net_forward.4} parent=23 // pred_region
        %p131 = scmp.lt.s32.totalorder %s9, 1
        %s132 = scalar_select %p131, %s9, 1
        %s133 = smul.addr %s132, 128
        %s134 = smul.addr %s133, 4
        %s135 = scalar_lea.vmem %s0, %s134
      $region28: #{net_forward.4} parent=23 // pred_fallthru
        _
    $region24: #{net_forward.4} parent=5 // pred_fallthru
      _
    %p136 = scmp.le.s32.totalorder 1, %s9
    %p137 = scmp.lt.s32.totalorder %s9, 3
    %p138 = pnand %p136, %p137
    %p139 = pneg %p138
    // Predicated region
    $region29: #{net_forward.4} parent=5 // pred_check
      _
    $region30: #{net_forward.4} parent=5 // pred_check_branch
      %141 = sbr.rel (%p138) target = $region32
    $region31: #{net_forward.4} parent=5 // pred_region
      %s142 = ssub.s32 %s9, 1
      %p143 = scmp.lt.s32.totalorder %s14, 1
      %s144 = scalar_select %p143, %s14, 1
      %s145 = smul.addr %s144, 128
      %s146 = smul.addr %s145, 4
      %s147 = scalar_lea.vmem %s0, %s146
      %p148 = pneg %p35
      %p149 = pneg %p32
      %p150 = pneg %p56
      %p151 = pneg %p53
      %p152 = pneg %p77
      %p153 = pneg %p74
      %p154 = pneg %p103
      %p155 = pneg %p100
      %p156 = scmp.lt.s32.totalorder %s14, 1
      %s157 = scalar_select %p156, %s14, 1
      %s158 = smul.addr %s157, 2
      %s159 = smul.addr %s158, 8
      %s160 = scalar_lea.vmem %s3, %s159
      %p161 = scmp.lt.s32.totalorder %s14, 1
      %s162 = scalar_select %p161, %s14, 1
      %s163 = smul.addr %s162, 128
      %s164 = smul.addr %s163, 4
      %s165 = scalar_lea.vmem %s0, %s164
      %p166 = scmp.lt.s32.totalorder %s14, 1
      %s167 = scalar_select %p166, %s14, 1
      %s168 = smul.addr %s167, 2
      %s169 = smul.addr %s168, 8
      %s170 = scalar_lea.vmem %s3, %s169
      %v172 = vld [vmem:[%s1] sm:$0xff]
      %v173 = vld [vmem:[%s1 + $0x8] sm:$0xff]
      %v174 = vld [vmem:[%s165] sm:$0xf]
      %v175 = vld [vmem:[%s165 + $0x4] sm:$0xf]
      %v176 = vld [vmem:[%s165 + $0x8] sm:$0xf]
      %v177 = vld [vmem:[%s165 + $0xc] sm:$0xf]
      %v178 = vld [vmem:[%s165 + $0x10] sm:$0xf]
      %v179 = vld [vmem:[%s165 + $0x14] sm:$0xf]
      %v180 = vld [vmem:[%s165 + $0x18] sm:$0xf]
      %v181 = vld [vmem:[%s165 + $0x1c] sm:$0xf]
      %v182 = vld [vmem:[%s165 + $0x20] sm:$0xf]
      %v183 = vld [vmem:[%s165 + $0x24] sm:$0xf]
      %v184 = vld [vmem:[%s165 + $0x28] sm:$0xf]
      %v185 = vld [vmem:[%s165 + $0x2c] sm:$0xf]
      %v186 = vld [vmem:[%s165 + $0x30] sm:$0xf]
      %v187 = vld [vmem:[%s165 + $0x34] sm:$0xf]
      %v188 = vld [vmem:[%s165 + $0x38] sm:$0xf]
      %v189 = vld [vmem:[%s165 + $0x3c] sm:$0xf]
      %v190 = vld [vmem:[%s165 + $0x40] sm:$0xf]
      %v191 = vld [vmem:[%s165 + $0x44] sm:$0xf]
      %v192 = vld [vmem:[%s165 + $0x48] sm:$0xf]
      %v193 = vld [vmem:[%s165 + $0x4c] sm:$0xf]
      %v194 = vld [vmem:[%s165 + $0x50] sm:$0xf]
      %v195 = vld [vmem:[%s165 + $0x54] sm:$0xf]
      %v196 = vld [vmem:[%s165 + $0x58] sm:$0xf]
      %v197 = vld [vmem:[%s165 + $0x5c] sm:$0xf]
      %v198 = vld [vmem:[%s165 + $0x60] sm:$0xf]
      %v199 = vld [vmem:[%s165 + $0x64] sm:$0xf]
      %v200 = vld [vmem:[%s165 + $0x68] sm:$0xf]
      %v201 = vld [vmem:[%s165 + $0x6c] sm:$0xf]
      %v202 = vld [vmem:[%s165 + $0x70] sm:$0xf]
      %v203 = vld [vmem:[%s165 + $0x74] sm:$0xf]
      %v204 = vld [vmem:[%s165 + $0x78] sm:$0xf]
      %v205 = vld [vmem:[%s165 + $0x7c] sm:$0xf]
      %v208 = vunpack.c.l.b16 %v172
      %v209 = vunpack.c.h.b16 %v172
      %v210 = vunpack.c.l.b16 %v173
      %v211 = vunpack.c.h.b16 %v173
      %v212 = vpack.c.b16 %v210, %v208
      %v213 = vpack.c.b16 %v211, %v209
      %v248 = vunpack.c.l.b16 %v174
      %v249 = vunpack.c.l.b16 %v175
      %v250 = vunpack.c.l.b16 %v176
      %v251 = vunpack.c.l.b16 %v177
      %v252 = vunpack.c.l.b16 %v178
      %v253 = vunpack.c.l.b16 %v179
      %v254 = vunpack.c.l.b16 %v180
      %v255 = vunpack.c.l.b16 %v181
      %v256 = vunpack.c.l.b16 %v182
      %v257 = vunpack.c.l.b16 %v183
      %v258 = vunpack.c.l.b16 %v184
      %v259 = vunpack.c.l.b16 %v185
      %v260 = vunpack.c.l.b16 %v186
      %v261 = vunpack.c.l.b16 %v187
      %v262 = vunpack.c.l.b16 %v188
      %v263 = vunpack.c.l.b16 %v189
      %v264 = vunpack.c.l.b16 %v190
      %v265 = vunpack.c.l.b16 %v191
      %v266 = vunpack.c.l.b16 %v192
      %v267 = vunpack.c.l.b16 %v193
      %v268 = vunpack.c.l.b16 %v194
      %v269 = vunpack.c.l.b16 %v195
      %v270 = vunpack.c.l.b16 %v196
      %v271 = vunpack.c.l.b16 %v197
      %v272 = vunpack.c.l.b16 %v198
      %v273 = vunpack.c.l.b16 %v199
      %v274 = vunpack.c.l.b16 %v200
      %v275 = vunpack.c.l.b16 %v201
      %v276 = vunpack.c.l.b16 %v202
      %v277 = vunpack.c.l.b16 %v203
      %v278 = vunpack.c.l.b16 %v204
      %v279 = vunpack.c.l.b16 %v205
      %v280 = vpack.c.b16 %v249, %v248
      %v281 = vpack.c.b16 %v251, %v250
      %v282 = vpack.c.b16 %v253, %v252
      %v283 = vpack.c.b16 %v255, %v254
      %v284 = vpack.c.b16 %v257, %v256
      %v285 = vpack.c.b16 %v259, %v258
      %v286 = vpack.c.b16 %v261, %v260
      %v287 = vpack.c.b16 %v263, %v262
      %v288 = vpack.c.b16 %v265, %v264
      %v289 = vpack.c.b16 %v267, %v266
      %v290 = vpack.c.b16 %v269, %v268
      %v291 = vpack.c.b16 %v271, %v270
      %v292 = vpack.c.b16 %v273, %v272
      %v293 = vpack.c.b16 %v275, %v274
      %v294 = vpack.c.b16 %v277, %v276
      %v295 = vpack.c.b16 %v279, %v278
      %312 = vmatprep.subr.bf16.mxu0 0
      %313 = vmatpush1.bf16.msra.mxu0 %v287
      %314 = vmatprep.subr.bf16.mxu0 0
      %315 = vmatpush1.bf16.msra.mxu0 %v286
      %316 = vmatprep.subr.bf16.mxu0 0
      %317 = vmatpush1.bf16.msra.mxu0 %v285
      %318 = vmatprep.subr.bf16.mxu0 0
      %319 = vmatpush1.bf16.msra.mxu0 %v284
      %320 = vmatprep.subr.bf16.mxu0 0
      %321 = vmatpush1.bf16.msra.mxu0 %v283
      %322 = vmatprep.subr.bf16.mxu0 0
      %323 = vmatpush1.bf16.msra.mxu0 %v282
      %324 = vmatprep.subr.bf16.mxu0 0
      %325 = vmatpush1.bf16.msra.mxu0 %v281
      %326 = vmatprep.subr.bf16.mxu0 0
      %327 = vmatpush1.bf16.msra.mxu0 %v280
      %328 = vmatprep.subr.bf16.mxu0 0
      %329 = vmatpush2.bf16.msra.mxu0 %v295
      %330 = vmatprep.subr.bf16.mxu0 0
      %331 = vmatpush2.bf16.msra.mxu0 %v294
      %332 = vmatprep.subr.bf16.mxu0 0
      %333 = vmatpush2.bf16.msra.mxu0 %v293
      %334 = vmatprep.subr.bf16.mxu0 0
      %335 = vmatpush2.bf16.msra.mxu0 %v292
      %336 = vmatprep.subr.bf16.mxu0 0
      %337 = vmatpush2.bf16.msra.mxu0 %v291
      %338 = vmatprep.subr.bf16.mxu0 0
      %339 = vmatpush2.bf16.msra.mxu0 %v290
      %340 = vmatprep.subr.bf16.mxu0 0
      %341 = vmatpush2.bf16.msra.mxu0 %v289
      %342 = vmatprep.subr.bf16.mxu0 0
      %343 = vmatpush2.bf16.msra.mxu0 %v288
      %344 = vmatprep.mubr.bf16.mxu0 %v213
      %345 = vmatmul.mubr.bf16.gmra.mxu0 %v212
      %v346 = vpop.f32.mrf.mxu0
      %v347 = vadd.f32 0.0, %v346
      %v348 = vpop.f32.mrf.mxu0
      %v349 = vpop.f32.mrf.mxu0
      %v350 = vadd.f32 0.0, %v349
      %v351 = vpop.f32.mrf.mxu0
      %352 = vdwg.mxu0
      %s353 = scalar_lea.vmem %s165, 128
      %v354 = vld [vmem:[%s353] sm:$0xf]
      %v355 = vld [vmem:[%s353 + $0x4] sm:$0xf]
      %v356 = vld [vmem:[%s353 + $0x8] sm:$0xf]
      %v357 = vld [vmem:[%s353 + $0xc] sm:$0xf]
      %v358 = vld [vmem:[%s353 + $0x10] sm:$0xf]
      %v359 = vld [vmem:[%s353 + $0x14] sm:$0xf]
      %v360 = vld [vmem:[%s353 + $0x18] sm:$0xf]
      %v361 = vld [vmem:[%s353 + $0x1c] sm:$0xf]
      %v362 = vld [vmem:[%s353 + $0x20] sm:$0xf]
      %v363 = vld [vmem:[%s353 + $0x24] sm:$0xf]
      %v364 = vld [vmem:[%s353 + $0x28] sm:$0xf]
      %v365 = vld [vmem:[%s353 + $0x2c] sm:$0xf]
      %v366 = vld [vmem:[%s353 + $0x30] sm:$0xf]
      %v367 = vld [vmem:[%s353 + $0x34] sm:$0xf]
      %v368 = vld [vmem:[%s353 + $0x38] sm:$0xf]
      %v369 = vld [vmem:[%s353 + $0x3c] sm:$0xf]
      %v370 = vld [vmem:[%s353 + $0x40] sm:$0xf]
      %v371 = vld [vmem:[%s353 + $0x44] sm:$0xf]
      %v372 = vld [vmem:[%s353 + $0x48] sm:$0xf]
      %v373 = vld [vmem:[%s353 + $0x4c] sm:$0xf]
      %v374 = vld [vmem:[%s353 + $0x50] sm:$0xf]
      %v375 = vld [vmem:[%s353 + $0x54] sm:$0xf]
      %v376 = vld [vmem:[%s353 + $0x58] sm:$0xf]
      %v377 = vld [vmem:[%s353 + $0x5c] sm:$0xf]
      %v378 = vld [vmem:[%s353 + $0x60] sm:$0xf]
      %v379 = vld [vmem:[%s353 + $0x64] sm:$0xf]
      %v380 = vld [vmem:[%s353 + $0x68] sm:$0xf]
      %v381 = vld [vmem:[%s353 + $0x6c] sm:$0xf]
      %v382 = vld [vmem:[%s353 + $0x70] sm:$0xf]
      %v383 = vld [vmem:[%s353 + $0x74] sm:$0xf]
      %v384 = vld [vmem:[%s353 + $0x78] sm:$0xf]
      %v385 = vld [vmem:[%s353 + $0x7c] sm:$0xf]
      %v418 = vunpack.c.l.b16 %v354
      %v419 = vunpack.c.l.b16 %v355
      %v420 = vunpack.c.l.b16 %v356
      %v421 = vunpack.c.l.b16 %v357
      %v422 = vunpack.c.l.b16 %v358
      %v423 = vunpack.c.l.b16 %v359
      %v424 = vunpack.c.l.b16 %v360
      %v425 = vunpack.c.l.b16 %v361
      %v426 = vunpack.c.l.b16 %v362
      %v427 = vunpack.c.l.b16 %v363
      %v428 = vunpack.c.l.b16 %v364
      %v429 = vunpack.c.l.b16 %v365
      %v430 = vunpack.c.l.b16 %v366
      %v431 = vunpack.c.l.b16 %v367
      %v432 = vunpack.c.l.b16 %v368
      %v433 = vunpack.c.l.b16 %v369
      %v434 = vunpack.c.l.b16 %v370
      %v435 = vunpack.c.l.b16 %v371
      %v436 = vunpack.c.l.b16 %v372
      %v437 = vunpack.c.l.b16 %v373
      %v438 = vunpack.c.l.b16 %v374
      %v439 = vunpack.c.l.b16 %v375
      %v440 = vunpack.c.l.b16 %v376
      %v441 = vunpack.c.l.b16 %v377
      %v442 = vunpack.c.l.b16 %v378
      %v443 = vunpack.c.l.b16 %v379
      %v444 = vunpack.c.l.b16 %v380
      %v445 = vunpack.c.l.b16 %v381
      %v446 = vunpack.c.l.b16 %v382
      %v447 = vunpack.c.l.b16 %v383
      %v448 = vunpack.c.l.b16 %v384
      %v449 = vunpack.c.l.b16 %v385
      %v450 = vpack.c.b16 %v419, %v418
      %v451 = vpack.c.b16 %v421, %v420
      %v452 = vpack.c.b16 %v423, %v422
      %v453 = vpack.c.b16 %v425, %v424
      %v454 = vpack.c.b16 %v427, %v426
      %v455 = vpack.c.b16 %v429, %v428
      %v456 = vpack.c.b16 %v431, %v430
      %v457 = vpack.c.b16 %v433, %v432
      %v458 = vpack.c.b16 %v435, %v434
      %v459 = vpack.c.b16 %v437, %v436
      %v460 = vpack.c.b16 %v439, %v438
      %v461 = vpack.c.b16 %v441, %v440
      %v462 = vpack.c.b16 %v443, %v442
      %v463 = vpack.c.b16 %v445, %v444
      %v464 = vpack.c.b16 %v447, %v446
      %v465 = vpack.c.b16 %v449, %v448
      %482 = vmatprep.subr.bf16.mxu0 0
      %483 = vmatpush1.bf16.msra.mxu0 %v457
      %484 = vmatprep.subr.bf16.mxu0 0
      %485 = vmatpush1.bf16.msra.mxu0 %v456
      %486 = vmatprep.subr.bf16.mxu0 0
      %487 = vmatpush1.bf16.msra.mxu0 %v455
      %488 = vmatprep.subr.bf16.mxu0 0
      %489 = vmatpush1.bf16.msra.mxu0 %v454
      %490 = vmatprep.subr.bf16.mxu0 0
      %491 = vmatpush1.bf16.msra.mxu0 %v453
      %492 = vmatprep.subr.bf16.mxu0 0
      %493 = vmatpush1.bf16.msra.mxu0 %v452
      %494 = vmatprep.subr.bf16.mxu0 0
      %495 = vmatpush1.bf16.msra.mxu0 %v451
      %496 = vmatprep.subr.bf16.mxu0 0
      %497 = vmatpush1.bf16.msra.mxu0 %v450
      %498 = vmatprep.subr.bf16.mxu0 0
      %499 = vmatpush2.bf16.msra.mxu0 %v465
      %500 = vmatprep.subr.bf16.mxu0 0
      %501 = vmatpush2.bf16.msra.mxu0 %v464
      %502 = vmatprep.subr.bf16.mxu0 0
      %503 = vmatpush2.bf16.msra.mxu0 %v463
      %504 = vmatprep.subr.bf16.mxu0 0
      %505 = vmatpush2.bf16.msra.mxu0 %v462
      %506 = vmatprep.subr.bf16.mxu0 0
      %507 = vmatpush2.bf16.msra.mxu0 %v461
      %508 = vmatprep.subr.bf16.mxu0 0
      %509 = vmatpush2.bf16.msra.mxu0 %v460
      %510 = vmatprep.subr.bf16.mxu0 0
      %511 = vmatpush2.bf16.msra.mxu0 %v459
      %512 = vmatprep.subr.bf16.mxu0 0
      %513 = vmatpush2.bf16.msra.mxu0 %v458
      %514 = vmatprep.mubr.bf16.mxu0 %v213
      %515 = vmatmul.mubr.bf16.gmra.mxu0 %v212
      %v516 = vpop.f32.mrf.mxu0
      %v517 = vadd.f32 0.0, %v516
      %v518 = vpop.f32.mrf.mxu0
      %v519 = vpop.f32.mrf.mxu0
      %v520 = vadd.f32 0.0, %v519
      %v521 = vpop.f32.mrf.mxu0
      %522 = vdwg.mxu0
      %v523 = vmax.f32 %v347, %v517
      %v524 = vmax.f32 %v350, %v520
      %s525 = scalar_lea.vmem %s165, 256
      %v526 = vld [vmem:[%s525] sm:$0xf]
      %v527 = vld [vmem:[%s525 + $0x4] sm:$0xf]
      %v528 = vld [vmem:[%s525 + $0x8] sm:$0xf]
      %v529 = vld [vmem:[%s525 + $0xc] sm:$0xf]
      %v530 = vld [vmem:[%s525 + $0x10] sm:$0xf]
      %v531 = vld [vmem:[%s525 + $0x14] sm:$0xf]
      %v532 = vld [vmem:[%s525 + $0x18] sm:$0xf]
      %v533 = vld [vmem:[%s525 + $0x1c] sm:$0xf]
      %v534 = vld [vmem:[%s525 + $0x20] sm:$0xf]
      %v535 = vld [vmem:[%s525 + $0x24] sm:$0xf]
      %v536 = vld [vmem:[%s525 + $0x28] sm:$0xf]
      %v537 = vld [vmem:[%s525 + $0x2c] sm:$0xf]
      %v538 = vld [vmem:[%s525 + $0x30] sm:$0xf]
      %v539 = vld [vmem:[%s525 + $0x34] sm:$0xf]
      %v540 = vld [vmem:[%s525 + $0x38] sm:$0xf]
      %v541 = vld [vmem:[%s525 + $0x3c] sm:$0xf]
      %v542 = vld [vmem:[%s525 + $0x40] sm:$0xf]
      %v543 = vld [vmem:[%s525 + $0x44] sm:$0xf]
      %v544 = vld [vmem:[%s525 + $0x48] sm:$0xf]
      %v545 = vld [vmem:[%s525 + $0x4c] sm:$0xf]
      %v546 = vld [vmem:[%s525 + $0x50] sm:$0xf]
      %v547 = vld [vmem:[%s525 + $0x54] sm:$0xf]
      %v548 = vld [vmem:[%s525 + $0x58] sm:$0xf]
      %v549 = vld [vmem:[%s525 + $0x5c] sm:$0xf]
      %v550 = vld [vmem:[%s525 + $0x60] sm:$0xf]
      %v551 = vld [vmem:[%s525 + $0x64] sm:$0xf]
      %v552 = vld [vmem:[%s525 + $0x68] sm:$0xf]
      %v553 = vld [vmem:[%s525 + $0x6c] sm:$0xf]
      %v554 = vld [vmem:[%s525 + $0x70] sm:$0xf]
      %v555 = vld [vmem:[%s525 + $0x74] sm:$0xf]
      %v556 = vld [vmem:[%s525 + $0x78] sm:$0xf]
      %v557 = vld [vmem:[%s525 + $0x7c] sm:$0xf]
      %v590 = vunpack.c.l.b16 %v526
      %v591 = vunpack.c.l.b16 %v527
      %v592 = vunpack.c.l.b16 %v528
      %v593 = vunpack.c.l.b16 %v529
      %v594 = vunpack.c.l.b16 %v530
      %v595 = vunpack.c.l.b16 %v531
      %v596 = vunpack.c.l.b16 %v532
      %v597 = vunpack.c.l.b16 %v533
      %v598 = vunpack.c.l.b16 %v534
      %v599 = vunpack.c.l.b16 %v535
      %v600 = vunpack.c.l.b16 %v536
      %v601 = vunpack.c.l.b16 %v537
      %v602 = vunpack.c.l.b16 %v538
      %v603 = vunpack.c.l.b16 %v539
      %v604 = vunpack.c.l.b16 %v540
      %v605 = vunpack.c.l.b16 %v541
      %v606 = vunpack.c.l.b16 %v542
      %v607 = vunpack.c.l.b16 %v543
      %v608 = vunpack.c.l.b16 %v544
      %v609 = vunpack.c.l.b16 %v545
      %v610 = vunpack.c.l.b16 %v546
      %v611 = vunpack.c.l.b16 %v547
      %v612 = vunpack.c.l.b16 %v548
      %v613 = vunpack.c.l.b16 %v549
      %v614 = vunpack.c.l.b16 %v550
      %v615 = vunpack.c.l.b16 %v551
      %v616 = vunpack.c.l.b16 %v552
      %v617 = vunpack.c.l.b16 %v553
      %v618 = vunpack.c.l.b16 %v554
      %v619 = vunpack.c.l.b16 %v555
      %v620 = vunpack.c.l.b16 %v556
      %v621 = vunpack.c.l.b16 %v557
      %v622 = vpack.c.b16 %v591, %v590
      %v623 = vpack.c.b16 %v593, %v592
      %v624 = vpack.c.b16 %v595, %v594
      %v625 = vpack.c.b16 %v597, %v596
      %v626 = vpack.c.b16 %v599, %v598
      %v627 = vpack.c.b16 %v601, %v600
      %v628 = vpack.c.b16 %v603, %v602
      %v629 = vpack.c.b16 %v605, %v604
      %v630 = vpack.c.b16 %v607, %v606
      %v631 = vpack.c.b16 %v609, %v608
      %v632 = vpack.c.b16 %v611, %v610
      %v633 = vpack.c.b16 %v613, %v612
      %v634 = vpack.c.b16 %v615, %v614
      %v635 = vpack.c.b16 %v617, %v616
      %v636 = vpack.c.b16 %v619, %v618
      %v637 = vpack.c.b16 %v621, %v620
      %654 = vmatprep.subr.bf16.mxu0 0
      %655 = vmatpush1.bf16.msra.mxu0 %v629
      %656 = vmatprep.subr.bf16.mxu0 0
      %657 = vmatpush1.bf16.msra.mxu0 %v628
      %658 = vmatprep.subr.bf16.mxu0 0
      %659 = vmatpush1.bf16.msra.mxu0 %v627
      %660 = vmatprep.subr.bf16.mxu0 0
      %661 = vmatpush1.bf16.msra.mxu0 %v626
      %662 = vmatprep.subr.bf16.mxu0 0
      %663 = vmatpush1.bf16.msra.mxu0 %v625
      %664 = vmatprep.subr.bf16.mxu0 0
      %665 = vmatpush1.bf16.msra.mxu0 %v624
      %666 = vmatprep.subr.bf16.mxu0 0
      %667 = vmatpush1.bf16.msra.mxu0 %v623
      %668 = vmatprep.subr.bf16.mxu0 0
      %669 = vmatpush1.bf16.msra.mxu0 %v622
      %670 = vmatprep.subr.bf16.mxu0 0
      %671 = vmatpush2.bf16.msra.mxu0 %v637
      %672 = vmatprep.subr.bf16.mxu0 0
      %673 = vmatpush2.bf16.msra.mxu0 %v636
      %674 = vmatprep.subr.bf16.mxu0 0
      %675 = vmatpush2.bf16.msra.mxu0 %v635
      %676 = vmatprep.subr.bf16.mxu0 0
      %677 = vmatpush2.bf16.msra.mxu0 %v634
      %678 = vmatprep.subr.bf16.mxu0 0
      %679 = vmatpush2.bf16.msra.mxu0 %v633
      %680 = vmatprep.subr.bf16.mxu0 0
      %681 = vmatpush2.bf16.msra.mxu0 %v632
      %682 = vmatprep.subr.bf16.mxu0 0
      %683 = vmatpush2.bf16.msra.mxu0 %v631
      %684 = vmatprep.subr.bf16.mxu0 0
      %685 = vmatpush2.bf16.msra.mxu0 %v630
      %686 = vmatprep.mubr.bf16.mxu0 %v213
      %687 = vmatmul.mubr.bf16.gmra.mxu0 %v212
      %v688 = vpop.f32.mrf.mxu0
      %v689 = vadd.f32 0.0, %v688
      %v690 = vpop.f32.mrf.mxu0
      %v691 = vpop.f32.mrf.mxu0
      %v692 = vadd.f32 0.0, %v691
      %v693 = vpop.f32.mrf.mxu0
      %694 = vdwg.mxu0
      %s695 = scalar_lea.vmem %s165, 384
      %v696 = vld [vmem:[%s695] sm:$0xf]
      %v697 = vld [vmem:[%s695 + $0x4] sm:$0xf]
      %v698 = vld [vmem:[%s695 + $0x8] sm:$0xf]
      %v699 = vld [vmem:[%s695 + $0xc] sm:$0xf]
      %v700 = vld [vmem:[%s695 + $0x10] sm:$0xf]
      %v701 = vld [vmem:[%s695 + $0x14] sm:$0xf]
      %v702 = vld [vmem:[%s695 + $0x18] sm:$0xf]
      %v703 = vld [vmem:[%s695 + $0x1c] sm:$0xf]
      %v704 = vld [vmem:[%s695 + $0x20] sm:$0xf]
      %v705 = vld [vmem:[%s695 + $0x24] sm:$0xf]
      %v706 = vld [vmem:[%s695 + $0x28] sm:$0xf]
      %v707 = vld [vmem:[%s695 + $0x2c] sm:$0xf]
      %v708 = vld [vmem:[%s695 + $0x30] sm:$0xf]
      %v709 = vld [vmem:[%s695 + $0x34] sm:$0xf]
      %v710 = vld [vmem:[%s695 + $0x38] sm:$0xf]
      %v711 = vld [vmem:[%s695 + $0x3c] sm:$0xf]
      %v712 = vld [vmem:[%s695 + $0x40] sm:$0xf]
      %v713 = vld [vmem:[%s695 + $0x44] sm:$0xf]
      %v714 = vld [vmem:[%s695 + $0x48] sm:$0xf]
      %v715 = vld [vmem:[%s695 + $0x4c] sm:$0xf]
      %v716 = vld [vmem:[%s695 + $0x50] sm:$0xf]
      %v717 = vld [vmem:[%s695 + $0x54] sm:$0xf]
      %v718 = vld [vmem:[%s695 + $0x58] sm:$0xf]
      %v719 = vld [vmem:[%s695 + $0x5c] sm:$0xf]
      %v720 = vld [vmem:[%s695 + $0x60] sm:$0xf]
      %v721 = vld [vmem:[%s695 + $0x64] sm:$0xf]
      %v722 = vld [vmem:[%s695 + $0x68] sm:$0xf]
      %v723 = vld [vmem:[%s695 + $0x6c] sm:$0xf]
      %v724 = vld [vmem:[%s695 + $0x70] sm:$0xf]
      %v725 = vld [vmem:[%s695 + $0x74] sm:$0xf]
      %v726 = vld [vmem:[%s695 + $0x78] sm:$0xf]
      %v727 = vld [vmem:[%s695 + $0x7c] sm:$0xf]
      %v760 = vunpack.c.l.b16 %v696
      %v761 = vunpack.c.l.b16 %v697
      %v762 = vunpack.c.l.b16 %v698
      %v763 = vunpack.c.l.b16 %v699
      %v764 = vunpack.c.l.b16 %v700
      %v765 = vunpack.c.l.b16 %v701
      %v766 = vunpack.c.l.b16 %v702
      %v767 = vunpack.c.l.b16 %v703
      %v768 = vunpack.c.l.b16 %v704
      %v769 = vunpack.c.l.b16 %v705
      %v770 = vunpack.c.l.b16 %v706
      %v771 = vunpack.c.l.b16 %v707
      %v772 = vunpack.c.l.b16 %v708
      %v773 = vunpack.c.l.b16 %v709
      %v774 = vunpack.c.l.b16 %v710
      %v775 = vunpack.c.l.b16 %v711
      %v776 = vunpack.c.l.b16 %v712
      %v777 = vunpack.c.l.b16 %v713
      %v778 = vunpack.c.l.b16 %v714
      %v779 = vunpack.c.l.b16 %v715
      %v780 = vunpack.c.l.b16 %v716
      %v781 = vunpack.c.l.b16 %v717
      %v782 = vunpack.c.l.b16 %v718
      %v783 = vunpack.c.l.b16 %v719
      %v784 = vunpack.c.l.b16 %v720
      %v785 = vunpack.c.l.b16 %v721
      %v786 = vunpack.c.l.b16 %v722
      %v787 = vunpack.c.l.b16 %v723
      %v788 = vunpack.c.l.b16 %v724
      %v789 = vunpack.c.l.b16 %v725
      %v790 = vunpack.c.l.b16 %v726
      %v791 = vunpack.c.l.b16 %v727
      %v792 = vpack.c.b16 %v761, %v760
      %v793 = vpack.c.b16 %v763, %v762
      %v794 = vpack.c.b16 %v765, %v764
      %v795 = vpack.c.b16 %v767, %v766
      %v796 = vpack.c.b16 %v769, %v768
      %v797 = vpack.c.b16 %v771, %v770
      %v798 = vpack.c.b16 %v773, %v772
      %v799 = vpack.c.b16 %v775, %v774
      %v800 = vpack.c.b16 %v777, %v776
      %v801 = vpack.c.b16 %v779, %v778
      %v802 = vpack.c.b16 %v781, %v780
      %v803 = vpack.c.b16 %v783, %v782
      %v804 = vpack.c.b16 %v785, %v784
      %v805 = vpack.c.b16 %v787, %v786
      %v806 = vpack.c.b16 %v789, %v788
      %v807 = vpack.c.b16 %v791, %v790
      %824 = vmatprep.subr.bf16.mxu0 0
      %825 = vmatpush1.bf16.msra.mxu0 %v799
      %826 = vmatprep.subr.bf16.mxu0 0
      %827 = vmatpush1.bf16.msra.mxu0 %v798
      %828 = vmatprep.subr.bf16.mxu0 0
      %829 = vmatpush1.bf16.msra.mxu0 %v797
      %830 = vmatprep.subr.bf16.mxu0 0
      %831 = vmatpush1.bf16.msra.mxu0 %v796
      %832 = vmatprep.subr.bf16.mxu0 0
      %833 = vmatpush1.bf16.msra.mxu0 %v795
      %834 = vmatprep.subr.bf16.mxu0 0
      %835 = vmatpush1.bf16.msra.mxu0 %v794
      %836 = vmatprep.subr.bf16.mxu0 0
      %837 = vmatpush1.bf16.msra.mxu0 %v793
      %838 = vmatprep.subr.bf16.mxu0 0
      %839 = vmatpush1.bf16.msra.mxu0 %v792
      %840 = vmatprep.subr.bf16.mxu0 0
      %841 = vmatpush2.bf16.msra.mxu0 %v807
      %842 = vmatprep.subr.bf16.mxu0 0
      %843 = vmatpush2.bf16.msra.mxu0 %v806
      %844 = vmatprep.subr.bf16.mxu0 0
      %845 = vmatpush2.bf16.msra.mxu0 %v805
      %846 = vmatprep.subr.bf16.mxu0 0
      %847 = vmatpush2.bf16.msra.mxu0 %v804
      %848 = vmatprep.subr.bf16.mxu0 0
      %849 = vmatpush2.bf16.msra.mxu0 %v803
      %850 = vmatprep.subr.bf16.mxu0 0
      %851 = vmatpush2.bf16.msra.mxu0 %v802
      %852 = vmatprep.subr.bf16.mxu0 0
      %853 = vmatpush2.bf16.msra.mxu0 %v801
      %854 = vmatprep.subr.bf16.mxu0 0
      %855 = vmatpush2.bf16.msra.mxu0 %v800
      %856 = vmatprep.mubr.bf16.mxu0 %v213
      %857 = vmatmul.mubr.bf16.gmra.mxu0 %v212
      %v858 = vpop.f32.mrf.mxu0
      %v859 = vadd.f32 0.0, %v858
      %v860 = vpop.f32.mrf.mxu0
      %v861 = vpop.f32.mrf.mxu0
      %v862 = vadd.f32 0.0, %v861
      %v863 = vpop.f32.mrf.mxu0
      %864 = vdwg.mxu0
      %v865 = vmax.f32 %v689, %v859
      %v866 = vmax.f32 %v692, %v862
      %v867 = vmax.f32 %v523, %v865
      %v868 = vmax.f32 %v524, %v866
      %v869 = vld [vmem:[%s2] sm:$0xff]
      %v870 = vld [vmem:[%s2 + $0x8] sm:$0xff]
      %872 = vset.pattern.permute.xlu0 0
      %873 = vperm.xlu0 %872, %v869
      %v874 = vpop.permute.xlu0 %873
      %877 = vset.pattern.permute.xlu0 0
      %878 = vperm.xlu0 %877, %v870
      %v879 = vpop.permute.xlu0 %878
      %v881 = vadd.f32 %v867, %v874
      %v882 = vadd.f32 %v868, %v879
      %v883 = vmax.f32 %v881, 0.0
      %v884 = vmax.f32 %v882, 0.0
      %vm885 = vcmask 203776
      %886 = vst.msk [vmem:[%s170] sm:$0xff] %vm885, %v883
      %887 = vst.msk [vmem:[%s170 + $0x8] sm:$0xff] %vm885, %v884
      %p888 = scmp.lt.s32.totalorder %s14, 1
      %s889 = scalar_select %p888, %s14, 1
      %s890 = smul.addr %s889, 2
      %s891 = smul.addr %s890, 8
      %s892 = scalar_lea.vmem %s3, %s891
      // Predicated region
      $region33: #{net_forward.4} parent=31 // pred_check
        %p893 = pneg %p100
      $region34: #{net_forward.4} parent=31 // pred_check_branch
        %895 = sbr.rel (%p893) target = $region36
      $region35: #{net_forward.4} parent=31 // pred_region
        _
      $region36: #{net_forward.4} parent=31 // pred_fallthru
        _
    $region32: #{net_forward.4} parent=5 // pred_fallthru
      _
    %p896 = scmp.le.s32.totalorder 2, %s9
    // Predicated region
    $region37: #{net_forward.4} parent=5 // pred_check
      %p897 = pneg %p896
    $region38: #{net_forward.4} parent=5 // pred_check_branch
      %899 = sbr.rel (%p897) target = $region40
    $region39: #{net_forward.4} parent=5 // pred_region
      %s900 = ssub.s32 %s9, 2
      // Predicated region
      $region41: #{net_forward.4} parent=39 // pred_check
        %p901 = pneg %p106
      $region42: #{net_forward.4} parent=39 // pred_check_branch
        %903 = sbr.rel (%p901) target = $region44
      $region43: #{net_forward.4} parent=39 // pred_region
        %p904 = scmp.lt.s32.totalorder %s15, 1
        %s905 = scalar_select %p904, %s15, 1
        %s906 = smul.addr %s905, 2
        %s907 = smul.addr %s906, 8
        %s908 = scalar_lea.vmem %s3, %s907
      $region44: #{net_forward.4} parent=39 // pred_fallthru
        _
    $region40: #{net_forward.4} parent=5 // pred_fallthru
      _
  $region6: #{net_forward.4} parent=0 // loop_footer
    %s13 = sadd.s32 1, %s9
  $region7: #{net_forward.4} parent=0 // loop_footer_branch
    %8 = sbr.rel target = $region3
  $region8: #{net_forward.4} parent=0 // loop_exit
    _

// kernel: net_forward.5
$region0: #{net_forward.5}
  #allocation0 [shape = 'u32[]', space=smem, size = 0x4, offset = 0x4, fixed_abs, tag = 'smem constant byte address 0x4 - core index']
  #allocation1 [shape = 'u32[144,128]{1,0:T(1,128)}', space=vmem, size = 0x12000, scoped, tag = 'internal scratch']
  %s0 = inlined_call_operand.vmem [shape: bf16[2,400], index: 0, kind: input, shape index: {}]
  %s1 = inlined_call_operand.vmem [shape: bf16[400,256], index: 1, kind: input, shape index: {}]
  %s2 = inlined_call_operand.vmem [shape: f32[1,256], index: 2, kind: input, shape index: {}]
  %s3 = inlined_call_operand.vmem [shape: bf16[256,128], index: 3, kind: input, shape index: {}]
  %s4 = inlined_call_operand.vmem [shape: f32[1,128], index: 4, kind: input, shape index: {}]
  %s5 = inlined_call_operand.vmem [shape: bf16[128,128], index: 5, kind: input, shape index: {}]
  %s6 = inlined_call_operand.vmem [shape: f32[1,128], index: 6, kind: input, shape index: {}]
  %s7 = inlined_call_operand.hbm [shape: f32[2,128], index: 7, kind: output, shape index: {}]
  %s8 = sld [smem:[#allocation0]]
  $region38: #{net_forward.5} parent=0
    _
  %s10 = ssub.s32 1, %s8
  %s11 = scalar_select 0, %s10, %s8
  $region1: #{net_forward.5} parent=0
    #allocation2 [shape = 'u8[1024]{0}', space=vmem, size = 0x400, scoped, tag = 'output window, operand 0, single buffered']
    #allocation3 [shape = 's32[1]{0}', space=sflag, size = 0x4, scoped, tag = 'scoped memory for net_forward.5']
    %12 = vsyncpa [#allocation3], 0
    // Predicated region
    $region2: #{net_forward.5} parent=1 // pred_check
      _
    $region3: #{net_forward.5} parent=1 // pred_check_branch
      %14 = sbr.rel (0) target = $region5
    $region4: #{net_forward.5} parent=1 // pred_region
      _
    $region5: #{net_forward.5} parent=1 // pred_fallthru
      _
    // Predicated region
    $region6: #{net_forward.5} parent=1 // pred_check
      _
    $region7: #{net_forward.5} parent=1 // pred_check_branch
      %16 = sbr.rel (0) target = $region9
    $region8: #{net_forward.5} parent=1 // pred_region
      _
    $region9: #{net_forward.5} parent=1 // pred_fallthru
      _
    // Predicated region
    $region10: #{net_forward.5} parent=1 // pred_check
      _
    $region11: #{net_forward.5} parent=1 // pred_check_branch
      %18 = sbr.rel (0) target = $region13
    $region12: #{net_forward.5} parent=1 // pred_region
      _
    $region13: #{net_forward.5} parent=1 // pred_fallthru
      _
    // Predicated region
    $region14: #{net_forward.5} parent=1 // pred_check
      _
    $region15: #{net_forward.5} parent=1 // pred_check_branch
      %20 = sbr.rel (0) target = $region17
    $region16: #{net_forward.5} parent=1 // pred_region
      _
    $region17: #{net_forward.5} parent=1 // pred_fallthru
      _
    // Predicated region
    $region18: #{net_forward.5} parent=1 // pred_check
      _
    $region19: #{net_forward.5} parent=1 // pred_check_branch
      %22 = sbr.rel (0) target = $region21
    $region20: #{net_forward.5} parent=1 // pred_region
      _
    $region21: #{net_forward.5} parent=1 // pred_fallthru
      _
    // Predicated region
    $region22: #{net_forward.5} parent=1 // pred_check
      _
    $region23: #{net_forward.5} parent=1 // pred_check_branch
      %24 = sbr.rel (0) target = $region25
    $region24: #{net_forward.5} parent=1 // pred_region
      _
    $region25: #{net_forward.5} parent=1 // pred_fallthru
      _
    // Predicated region
    $region26: #{net_forward.5} parent=1 // pred_check
      _
    $region27: #{net_forward.5} parent=1 // pred_check_branch
      %26 = sbr.rel (0) target = $region29
    $region28: #{net_forward.5} parent=1 // pred_region
      _
    $region29: #{net_forward.5} parent=1 // pred_fallthru
      _
    %v28 = vld [vmem:[%s0] sm:$0xf]
    %v29 = vld [vmem:[%s1] sm:$0xff]
    %v30 = vld [vmem:[%s1 + $0x8] sm:$0xff]
    %v31 = vld [vmem:[%s1 + $0x10] sm:$0xff]
    %v32 = vld [vmem:[%s1 + $0x18] sm:$0xff]
    %v33 = vld [vmem:[%s1 + $0x20] sm:$0xff]
    %v34 = vld [vmem:[%s1 + $0x28] sm:$0xff]
    %v35 = vld [vmem:[%s1 + $0x30] sm:$0xff]
    %v36 = vld [vmem:[%s1 + $0x38] sm:$0xff]
    %v37 = vld [vmem:[%s1 + $0x40] sm:$0xff]
    %v38 = vld [vmem:[%s1 + $0x48] sm:$0xff]
    %v39 = vld [vmem:[%s1 + $0x50] sm:$0xff]
    %v40 = vld [vmem:[%s1 + $0x58] sm:$0xff]
    %v41 = vld [vmem:[%s1 + $0x60] sm:$0xff]
    %v42 = vld [vmem:[%s1 + $0x68] sm:$0xff]
    %v43 = vld [vmem:[%s1 + $0x70] sm:$0xff]
    %v44 = vld [vmem:[%s1 + $0x78] sm:$0xff]
    %v45 = vld [vmem:[%s1 + $0x80] sm:$0xff]
    %v46 = vld [vmem:[%s1 + $0x88] sm:$0xff]
    %v47 = vld [vmem:[%s1 + $0x90] sm:$0xff]
    %v48 = vld [vmem:[%s1 + $0x98] sm:$0xff]
    %v49 = vld [vmem:[%s1 + $0xa0] sm:$0xff]
    %v50 = vld [vmem:[%s1 + $0xa8] sm:$0xff]
    %v51 = vld [vmem:[%s1 + $0xb0] sm:$0xff]
    %v52 = vld [vmem:[%s1 + $0xb8] sm:$0xff]
    %v53 = vld [vmem:[%s1 + $0xc0] sm:$0xff]
    %v54 = vld [vmem:[%s1 + $0xc8] sm:$0xff]
    %v55 = vld [vmem:[%s1 + $0xd0] sm:$0xff]
    %v56 = vld [vmem:[%s1 + $0xd8] sm:$0xff]
    %v57 = vld [vmem:[%s1 + $0xe0] sm:$0xff]
    %v58 = vld [vmem:[%s1 + $0xe8] sm:$0xff]
    %v59 = vld [vmem:[%s1 + $0xf0] sm:$0xff]
    %v60 = vld [vmem:[%s1 + $0xf8] sm:$0xff]
    %v61 = vld [vmem:[%s1 + $0x100] sm:$0xff]
    %v62 = vld [vmem:[%s1 + $0x108] sm:$0xff]
    %v63 = vld [vmem:[%s1 + $0x110] sm:$0xff]
    %v64 = vld [vmem:[%s1 + $0x118] sm:$0xff]
    %v65 = vld [vmem:[%s1 + $0x120] sm:$0xff]
    %v66 = vld [vmem:[%s1 + $0x128] sm:$0xff]
    %v67 = vld [vmem:[%s1 + $0x130] sm:$0xff]
    %v68 = vld [vmem:[%s1 + $0x138] sm:$0xff]
    %v69 = vld [vmem:[%s1 + $0x140] sm:$0xff]
    %v70 = vld [vmem:[%s1 + $0x148] sm:$0xff]
    %v71 = vld [vmem:[%s1 + $0x150] sm:$0xff]
    %v72 = vld [vmem:[%s1 + $0x158] sm:$0xff]
    %v73 = vld [vmem:[%s1 + $0x160] sm:$0xff]
    %v74 = vld [vmem:[%s1 + $0x168] sm:$0xff]
    %v75 = vld [vmem:[%s1 + $0x170] sm:$0xff]
    %v76 = vld [vmem:[%s1 + $0x178] sm:$0xff]
    %v77 = vld [vmem:[%s1 + $0x180] sm:$0xff]
    %v78 = vld [vmem:[%s1 + $0x188] sm:$0xff]
    %v79 = vld [vmem:[%s2] sm:$0x3]
    %v81 = vlaneseq
    %v82 = vshrl.u32 %v81, 7
    %v83 = vsub.s32 0, %v82
    %v84 = vrot.slane %v79, %v83
    %v85 = vlaneseq
    %v86 = vshrl.u32 %v85, 7
    %v87 = vsub.s32 1, %v86
    %v88 = vrot.slane %v79, %v87
    %v93 = vunpack.c.l.s4 1966171168
    %v94 = vunpack.c.0.s8 %v93
    %v95 = vlaneseq
    %v96 = vshrl.u32 %v95, 7
    %v97 = vsub.s32 %v94, %v96
    %v98 = vrot.slane %v28, %v97
    %v99 = vcombine.high %v98, %v98
    %v101 = vunpack.c.l.s4 1966171168
    %v102 = vunpack.c.0.s8 %v101
    %v103 = vlaneseq
    %v104 = vshrl.u32 %v103, 7
    %v105 = vsub.s32 %v102, %v104
    %v106 = vrot.slane %v98, %v105
    %v108 = vunpack.c.l.s4 1966171168
    %v109 = vunpack.c.0.s8 %v108
    %v110 = vlaneseq
    %v111 = vshrl.u32 %v110, 7
    %v112 = vsub.s32 %v109, %v111
    %v113 = vrot.slane %v99, %v112
    %v114 = vcombine.high %v106, %v106
    %v115 = vcombine.high %v113, %v113
    %v169 = vunpack.c.l.b16 %v29
    %v170 = vunpack.c.h.b16 %v29
    %v171 = vunpack.c.l.b16 %v30
    %v172 = vunpack.c.h.b16 %v30
    %v173 = vunpack.c.l.b16 %v31
    %v174 = vunpack.c.h.b16 %v31
    %v175 = vunpack.c.l.b16 %v32
    %v176 = vunpack.c.h.b16 %v32
    %v177 = vunpack.c.l.b16 %v33
    %v178 = vunpack.c.h.b16 %v33
    %v179 = vunpack.c.l.b16 %v34
    %v180 = vunpack.c.h.b16 %v34
    %v181 = vunpack.c.l.b16 %v35
    %v182 = vunpack.c.h.b16 %v35
    %v183 = vunpack.c.l.b16 %v36
    %v184 = vunpack.c.h.b16 %v36
    %v185 = vunpack.c.l.b16 %v37
    %v186 = vunpack.c.h.b16 %v37
    %v187 = vunpack.c.l.b16 %v38
    %v188 = vunpack.c.h.b16 %v38
    %v189 = vunpack.c.l.b16 %v39
    %v190 = vunpack.c.h.b16 %v39
    %v191 = vunpack.c.l.b16 %v40
    %v192 = vunpack.c.h.b16 %v40
    %v193 = vunpack.c.l.b16 %v41
    %v194 = vunpack.c.h.b16 %v41
    %v195 = vunpack.c.l.b16 %v42
    %v196 = vunpack.c.h.b16 %v42
    %v197 = vunpack.c.l.b16 %v43
    %v198 = vunpack.c.h.b16 %v43
    %v199 = vunpack.c.l.b16 %v44
    %v200 = vunpack.c.h.b16 %v44
    %v201 = vunpack.c.l.b16 %v45
    %v202 = vunpack.c.h.b16 %v45
    %v203 = vunpack.c.l.b16 %v46
    %v204 = vunpack.c.h.b16 %v46
    %v205 = vunpack.c.l.b16 %v47
    %v206 = vunpack.c.h.b16 %v47
    %v207 = vunpack.c.l.b16 %v48
    %v208 = vunpack.c.h.b16 %v48
    %v209 = vunpack.c.l.b16 %v49
    %v210 = vunpack.c.h.b16 %v49
    %v211 = vunpack.c.l.b16 %v50
    %v212 = vunpack.c.h.b16 %v50
    %v213 = vunpack.c.l.b16 %v51
    %v214 = vunpack.c.h.b16 %v51
    %v215 = vunpack.c.l.b16 %v52
    %v216 = vunpack.c.h.b16 %v52
    %v217 = vunpack.c.l.b16 %v53
    %v218 = vunpack.c.h.b16 %v53
    %v219 = vunpack.c.l.b16 %v54
    %v220 = vunpack.c.h.b16 %v54
    %v221 = vunpack.c.l.b16 %v55
    %v222 = vunpack.c.h.b16 %v55
    %v223 = vunpack.c.l.b16 %v56
    %v224 = vunpack.c.h.b16 %v56
    %v225 = vunpack.c.l.b16 %v57
    %v226 = vunpack.c.h.b16 %v57
    %v227 = vunpack.c.l.b16 %v58
    %v228 = vunpack.c.h.b16 %v58
    %v229 = vunpack.c.l.b16 %v59
    %v230 = vunpack.c.h.b16 %v59
    %v231 = vunpack.c.l.b16 %v60
    %v232 = vunpack.c.h.b16 %v60
    %v233 = vunpack.c.l.b16 %v61
    %v234 = vunpack.c.h.b16 %v61
    %v235 = vunpack.c.l.b16 %v62
    %v236 = vunpack.c.h.b16 %v62
    %v237 = vunpack.c.l.b16 %v63
    %v238 = vunpack.c.h.b16 %v63
    %v239 = vunpack.c.l.b16 %v64
    %v240 = vunpack.c.h.b16 %v64
    %v241 = vunpack.c.l.b16 %v65
    %v242 = vunpack.c.h.b16 %v65
    %v243 = vunpack.c.l.b16 %v66
    %v244 = vunpack.c.h.b16 %v66
    %v245 = vunpack.c.l.b16 %v67
    %v246 = vunpack.c.h.b16 %v67
    %v247 = vunpack.c.l.b16 %v68
    %v248 = vunpack.c.h.b16 %v68
    %v249 = vunpack.c.l.b16 %v69
    %v250 = vunpack.c.h.b16 %v69
    %v251 = vunpack.c.l.b16 %v70
    %v252 = vunpack.c.h.b16 %v70
    %v253 = vunpack.c.l.b16 %v71
    %v254 = vunpack.c.h.b16 %v71
    %v255 = vunpack.c.l.b16 %v72
    %v256 = vunpack.c.h.b16 %v72
    %v257 = vunpack.c.l.b16 %v73
    %v258 = vunpack.c.h.b16 %v73
    %v259 = vunpack.c.l.b16 %v74
    %v260 = vunpack.c.h.b16 %v74
    %v261 = vunpack.c.l.b16 %v75
    %v262 = vunpack.c.h.b16 %v75
    %v263 = vunpack.c.l.b16 %v76
    %v264 = vunpack.c.h.b16 %v76
    %v265 = vunpack.c.l.b16 %v77
    %v266 = vunpack.c.h.b16 %v77
    %v267 = vunpack.c.l.b16 %v78
    %v268 = vunpack.c.h.b16 %v78
    %v269 = vpack.c.b16 %v171, %v169
    %v270 = vpack.c.b16 %v172, %v170
    %v271 = vpack.c.b16 %v175, %v173
    %v272 = vpack.c.b16 %v176, %v174
    %v273 = vpack.c.b16 %v179, %v177
    %v274 = vpack.c.b16 %v180, %v178
    %v275 = vpack.c.b16 %v183, %v181
    %v276 = vpack.c.b16 %v184, %v182
    %v277 = vpack.c.b16 %v187, %v185
    %v278 = vpack.c.b16 %v188, %v186
    %v279 = vpack.c.b16 %v191, %v189
    %v280 = vpack.c.b16 %v192, %v190
    %v281 = vpack.c.b16 %v195, %v193
    %v282 = vpack.c.b16 %v196, %v194
    %v283 = vpack.c.b16 %v199, %v197
    %v284 = vpack.c.b16 %v200, %v198
    %v285 = vpack.c.b16 %v203, %v201
    %v286 = vpack.c.b16 %v204, %v202
    %v287 = vpack.c.b16 %v207, %v205
    %v288 = vpack.c.b16 %v208, %v206
    %v289 = vpack.c.b16 %v211, %v209
    %v290 = vpack.c.b16 %v212, %v210
    %v291 = vpack.c.b16 %v215, %v213
    %v292 = vpack.c.b16 %v216, %v214
    %v293 = vpack.c.b16 %v219, %v217
    %v294 = vpack.c.b16 %v220, %v218
    %v295 = vpack.c.b16 %v223, %v221
    %v296 = vpack.c.b16 %v224, %v222
    %v297 = vpack.c.b16 %v227, %v225
    %v298 = vpack.c.b16 %v228, %v226
    %v299 = vpack.c.b16 %v231, %v229
    %v300 = vpack.c.b16 %v232, %v230
    %v301 = vpack.c.b16 %v235, %v233
    %v302 = vpack.c.b16 %v236, %v234
    %v303 = vpack.c.b16 %v239, %v237
    %v304 = vpack.c.b16 %v240, %v238
    %v305 = vpack.c.b16 %v243, %v241
    %v306 = vpack.c.b16 %v244, %v242
    %v307 = vpack.c.b16 %v247, %v245
    %v308 = vpack.c.b16 %v248, %v246
    %v309 = vpack.c.b16 %v251, %v249
    %v310 = vpack.c.b16 %v252, %v250
    %v311 = vpack.c.b16 %v255, %v253
    %v312 = vpack.c.b16 %v256, %v254
    %v313 = vpack.c.b16 %v259, %v257
    %v314 = vpack.c.b16 %v260, %v258
    %v315 = vpack.c.b16 %v263, %v261
    %v316 = vpack.c.b16 %v264, %v262
    %v317 = vpack.c.b16 %v267, %v265
    %v318 = vpack.c.b16 %v268, %v266
    %vm369 = vcmask 130048
    %v371 = vsel %vm369, %v115, 0
    %373 = vmatprep.subr.bf16.mxu0 %v284
    %374 = vmatpush1.bf16.msra.mxu0 %v283
    %375 = vmatprep.subr.bf16.mxu0 %v282
    %376 = vmatpush1.bf16.msra.mxu0 %v281
    %377 = vmatprep.subr.bf16.mxu0 %v280
    %378 = vmatpush1.bf16.msra.mxu0 %v279
    %379 = vmatprep.subr.bf16.mxu0 %v278
    %380 = vmatpush1.bf16.msra.mxu0 %v277
    %381 = vmatprep.subr.bf16.mxu0 %v276
    %382 = vmatpush1.bf16.msra.mxu0 %v275
    %383 = vmatprep.subr.bf16.mxu0 %v274
    %384 = vmatpush1.bf16.msra.mxu0 %v273
    %385 = vmatprep.subr.bf16.mxu0 %v272
    %386 = vmatpush1.bf16.msra.mxu0 %v271
    %387 = vmatprep.subr.bf16.mxu0 %v270
    %388 = vmatpush1.bf16.msra.mxu0 %v269
    %389 = vmatprep.subr.bf16.mxu0 %v300
    %390 = vmatpush2.bf16.msra.mxu0 %v299
    %391 = vmatprep.subr.bf16.mxu0 %v298
    %392 = vmatpush2.bf16.msra.mxu0 %v297
    %393 = vmatprep.subr.bf16.mxu0 %v296
    %394 = vmatpush2.bf16.msra.mxu0 %v295
    %395 = vmatprep.subr.bf16.mxu0 %v294
    %396 = vmatpush2.bf16.msra.mxu0 %v293
    %397 = vmatprep.subr.bf16.mxu0 %v292
    %398 = vmatpush2.bf16.msra.mxu0 %v291
    %399 = vmatprep.subr.bf16.mxu0 %v290
    %400 = vmatpush2.bf16.msra.mxu0 %v289
    %401 = vmatprep.subr.bf16.mxu0 %v288
    %402 = vmatpush2.bf16.msra.mxu0 %v287
    %403 = vmatprep.subr.bf16.mxu0 %v286
    %404 = vmatpush2.bf16.msra.mxu0 %v285
    %405 = vmatprep.mubr.bf16.mxu0 %v113
    %406 = vmatmul.mubr.bf16.gmra.mxu0 %v106
    %v407 = vpop.f32.mrf.mxu0
    %v408 = vadd.f32 %v84, %v407
    %v409 = vpop.f32.mrf.mxu0
    %v410 = vadd.f32 %v88, %v409
    %v411 = vpop.f32.mrf.mxu0
    %v412 = vpop.f32.mrf.mxu0
    %413 = vdwg.mxu0
    %414 = vmatprep.subr.bf16.mxu0 %v316
    %415 = vmatpush1.bf16.msra.mxu0 %v315
    %416 = vmatprep.subr.bf16.mxu0 %v314
    %417 = vmatpush1.bf16.msra.mxu0 %v313
    %418 = vmatprep.subr.bf16.mxu0 %v312
    %419 = vmatpush1.bf16.msra.mxu0 %v311
    %420 = vmatprep.subr.bf16.mxu0 %v310
    %421 = vmatpush1.bf16.msra.mxu0 %v309
    %422 = vmatprep.subr.bf16.mxu0 %v308
    %423 = vmatpush1.bf16.msra.mxu0 %v307
    %424 = vmatprep.subr.bf16.mxu0 %v306
    %425 = vmatpush1.bf16.msra.mxu0 %v305
    %426 = vmatprep.subr.bf16.mxu0 %v304
    %427 = vmatpush1.bf16.msra.mxu0 %v303
    %428 = vmatprep.subr.bf16.mxu0 %v302
    %429 = vmatpush1.bf16.msra.mxu0 %v301
    %430 = vmatprep.subr.bf16.mxu0 0
    %431 = vmatpush2.bf16.msra.mxu0 0
    %432 = vmatprep.subr.bf16.mxu0 0
    %433 = vmatpush2.bf16.msra.mxu0 0
    %434 = vmatprep.subr.bf16.mxu0 0
    %435 = vmatpush2.bf16.msra.mxu0 0
    %436 = vmatprep.subr.bf16.mxu0 0
    %437 = vmatpush2.bf16.msra.mxu0 0
    %438 = vmatprep.subr.bf16.mxu0 0
    %439 = vmatpush2.bf16.msra.mxu0 0
    %440 = vmatprep.subr.bf16.mxu0 0
    %441 = vmatpush2.bf16.msra.mxu0 0
    %442 = vmatprep.subr.bf16.mxu0 0
    %443 = vmatpush2.bf16.msra.mxu0 0
    %444 = vmatprep.subr.bf16.mxu0 %v318
    %445 = vmatpush2.bf16.msra.mxu0 %v317
    %446 = vmatprep.mubr.bf16.mxu0 %v371
    %447 = vmatmul.mubr.bf16.gmra.mxu0 %v114
    %v448 = vpop.f32.mrf.mxu0
    %v449 = vadd.f32 %v408, %v448
    %v450 = vpop.f32.mrf.mxu0
    %v451 = vadd.f32 %v410, %v450
    %v452 = vpop.f32.mrf.mxu0
    %v453 = vpop.f32.mrf.mxu0
    %454 = vdwg.mxu0
    %v455 = vmax.f32 %v449, 0.0
    %v456 = vmax.f32 %v451, 0.0
    %v457 = vpack.c.bf16 %v455, %v455
    %v458 = vpack.c.bf16 %v456, %v456
    %v459 = vld [vmem:[%s3] sm:$0xf]
    %v460 = vld [vmem:[%s3 + $0x4] sm:$0xf]
    %v461 = vld [vmem:[%s3 + $0x8] sm:$0xf]
    %v462 = vld [vmem:[%s3 + $0xc] sm:$0xf]
    %v463 = vld [vmem:[%s3 + $0x10] sm:$0xf]
    %v464 = vld [vmem:[%s3 + $0x14] sm:$0xf]
    %v465 = vld [vmem:[%s3 + $0x18] sm:$0xf]
    %v466 = vld [vmem:[%s3 + $0x1c] sm:$0xf]
    %v467 = vld [vmem:[%s3 + $0x20] sm:$0xf]
    %v468 = vld [vmem:[%s3 + $0x24] sm:$0xf]
    %v469 = vld [vmem:[%s3 + $0x28] sm:$0xf]
    %v470 = vld [vmem:[%s3 + $0x2c] sm:$0xf]
    %v471 = vld [vmem:[%s3 + $0x30] sm:$0xf]
    %v472 = vld [vmem:[%s3 + $0x34] sm:$0xf]
    %v473 = vld [vmem:[%s3 + $0x38] sm:$0xf]
    %v474 = vld [vmem:[%s3 + $0x3c] sm:$0xf]
    %v475 = vld [vmem:[%s3 + $0x40] sm:$0xf]
    %v476 = vld [vmem:[%s3 + $0x44] sm:$0xf]
    %v477 = vld [vmem:[%s3 + $0x48] sm:$0xf]
    %v478 = vld [vmem:[%s3 + $0x4c] sm:$0xf]
    %v479 = vld [vmem:[%s3 + $0x50] sm:$0xf]
    %v480 = vld [vmem:[%s3 + $0x54] sm:$0xf]
    %v481 = vld [vmem:[%s3 + $0x58] sm:$0xf]
    %v482 = vld [vmem:[%s3 + $0x5c] sm:$0xf]
    %v483 = vld [vmem:[%s3 + $0x60] sm:$0xf]
    %v484 = vld [vmem:[%s3 + $0x64] sm:$0xf]
    %v485 = vld [vmem:[%s3 + $0x68] sm:$0xf]
    %v486 = vld [vmem:[%s3 + $0x6c] sm:$0xf]
    %v487 = vld [vmem:[%s3 + $0x70] sm:$0xf]
    %v488 = vld [vmem:[%s3 + $0x74] sm:$0xf]
    %v489 = vld [vmem:[%s3 + $0x78] sm:$0xf]
    %v490 = vld [vmem:[%s3 + $0x7c] sm:$0xf]
    %v491 = vld [vmem:[%s4] sm:$0x1]
    %v493 = vlaneseq
    %v494 = vshrl.u32 %v493, 7
    %v495 = vsub.s32 0, %v494
    %v496 = vrot.slane %v491, %v495
    %v530 = vunpack.c.l.b16 %v459
    %v531 = vunpack.c.l.b16 %v460
    %v532 = vunpack.c.l.b16 %v461
    %v533 = vunpack.c.l.b16 %v462
    %v534 = vunpack.c.l.b16 %v463
    %v535 = vunpack.c.l.b16 %v464
    %v536 = vunpack.c.l.b16 %v465
    %v537 = vunpack.c.l.b16 %v466
    %v538 = vunpack.c.l.b16 %v467
    %v539 = vunpack.c.l.b16 %v468
    %v540 = vunpack.c.l.b16 %v469
    %v541 = vunpack.c.l.b16 %v470
    %v542 = vunpack.c.l.b16 %v471
    %v543 = vunpack.c.l.b16 %v472
    %v544 = vunpack.c.l.b16 %v473
    %v545 = vunpack.c.l.b16 %v474
    %v546 = vunpack.c.l.b16 %v475
    %v547 = vunpack.c.l.b16 %v476
    %v548 = vunpack.c.l.b16 %v477
    %v549 = vunpack.c.l.b16 %v478
    %v550 = vunpack.c.l.b16 %v479
    %v551 = vunpack.c.l.b16 %v480
    %v552 = vunpack.c.l.b16 %v481
    %v553 = vunpack.c.l.b16 %v482
    %v554 = vunpack.c.l.b16 %v483
    %v555 = vunpack.c.l.b16 %v484
    %v556 = vunpack.c.l.b16 %v485
    %v557 = vunpack.c.l.b16 %v486
    %v558 = vunpack.c.l.b16 %v487
    %v559 = vunpack.c.l.b16 %v488
    %v560 = vunpack.c.l.b16 %v489
    %v561 = vunpack.c.l.b16 %v490
    %v562 = vpack.c.b16 %v531, %v530
    %v563 = vpack.c.b16 %v533, %v532
    %v564 = vpack.c.b16 %v535, %v534
    %v565 = vpack.c.b16 %v537, %v536
    %v566 = vpack.c.b16 %v539, %v538
    %v567 = vpack.c.b16 %v541, %v540
    %v568 = vpack.c.b16 %v543, %v542
    %v569 = vpack.c.b16 %v545, %v544
    %v570 = vpack.c.b16 %v547, %v546
    %v571 = vpack.c.b16 %v549, %v548
    %v572 = vpack.c.b16 %v551, %v550
    %v573 = vpack.c.b16 %v553, %v552
    %v574 = vpack.c.b16 %v555, %v554
    %v575 = vpack.c.b16 %v557, %v556
    %v576 = vpack.c.b16 %v559, %v558
    %v577 = vpack.c.b16 %v561, %v560
    %594 = vmatprep.subr.bf16.mxu0 0
    %595 = vmatpush1.bf16.msra.mxu0 %v569
    %596 = vmatprep.subr.bf16.mxu0 0
    %597 = vmatpush1.bf16.msra.mxu0 %v568
    %598 = vmatprep.subr.bf16.mxu0 0
    %599 = vmatpush1.bf16.msra.mxu0 %v567
    %600 = vmatprep.subr.bf16.mxu0 0
    %601 = vmatpush1.bf16.msra.mxu0 %v566
    %602 = vmatprep.subr.bf16.mxu0 0
    %603 = vmatpush1.bf16.msra.mxu0 %v565
    %604 = vmatprep.subr.bf16.mxu0 0
    %605 = vmatpush1.bf16.msra.mxu0 %v564
    %606 = vmatprep.subr.bf16.mxu0 0
    %607 = vmatpush1.bf16.msra.mxu0 %v563
    %608 = vmatprep.subr.bf16.mxu0 0
    %609 = vmatpush1.bf16.msra.mxu0 %v562
    %610 = vmatprep.subr.bf16.mxu0 0
    %611 = vmatpush2.bf16.msra.mxu0 %v577
    %612 = vmatprep.subr.bf16.mxu0 0
    %613 = vmatpush2.bf16.msra.mxu0 %v576
    %614 = vmatprep.subr.bf16.mxu0 0
    %615 = vmatpush2.bf16.msra.mxu0 %v575
    %616 = vmatprep.subr.bf16.mxu0 0
    %617 = vmatpush2.bf16.msra.mxu0 %v574
    %618 = vmatprep.subr.bf16.mxu0 0
    %619 = vmatpush2.bf16.msra.mxu0 %v573
    %620 = vmatprep.subr.bf16.mxu0 0
    %621 = vmatpush2.bf16.msra.mxu0 %v572
    %622 = vmatprep.subr.bf16.mxu0 0
    %623 = vmatpush2.bf16.msra.mxu0 %v571
    %624 = vmatprep.subr.bf16.mxu0 0
    %625 = vmatpush2.bf16.msra.mxu0 %v570
    %626 = vmatprep.mubr.bf16.mxu0 %v458
    %627 = vmatmul.mubr.bf16.gmra.mxu0 %v457
    %v628 = vpop.f32.mrf.mxu0
    %v629 = vadd.f32 %v496, %v628
    %v630 = vpop.f32.mrf.mxu0
    %v631 = vpop.f32.mrf.mxu0
    %v632 = vpop.f32.mrf.mxu0
    %633 = vdwg.mxu0
    %v634 = vmax.f32 %v629, 0.0
    %v635 = vpack.c.bf16 %v634, %v634
    %v636 = vld [vmem:[%s5] sm:$0xf]
    %v637 = vld [vmem:[%s5 + $0x4] sm:$0xf]
    %v638 = vld [vmem:[%s5 + $0x8] sm:$0xf]
    %v639 = vld [vmem:[%s5 + $0xc] sm:$0xf]
    %v640 = vld [vmem:[%s5 + $0x10] sm:$0xf]
    %v641 = vld [vmem:[%s5 + $0x14] sm:$0xf]
    %v642 = vld [vmem:[%s5 + $0x18] sm:$0xf]
    %v643 = vld [vmem:[%s5 + $0x1c] sm:$0xf]
    %v644 = vld [vmem:[%s5 + $0x20] sm:$0xf]
    %v645 = vld [vmem:[%s5 + $0x24] sm:$0xf]
    %v646 = vld [vmem:[%s5 + $0x28] sm:$0xf]
    %v647 = vld [vmem:[%s5 + $0x2c] sm:$0xf]
    %v648 = vld [vmem:[%s5 + $0x30] sm:$0xf]
    %v649 = vld [vmem:[%s5 + $0x34] sm:$0xf]
    %v650 = vld [vmem:[%s5 + $0x38] sm:$0xf]
    %v651 = vld [vmem:[%s5 + $0x3c] sm:$0xf]
    %v652 = vld [vmem:[%s6] sm:$0x1]
    %v654 = vlaneseq
    %v655 = vshrl.u32 %v654, 7
    %v656 = vsub.s32 0, %v655
    %v657 = vrot.slane %v652, %v656
    %v675 = vunpack.c.l.b16 %v636
    %v676 = vunpack.c.l.b16 %v637
    %v677 = vunpack.c.l.b16 %v638
    %v678 = vunpack.c.l.b16 %v639
    %v679 = vunpack.c.l.b16 %v640
    %v680 = vunpack.c.l.b16 %v641
    %v681 = vunpack.c.l.b16 %v642
    %v682 = vunpack.c.l.b16 %v643
    %v683 = vunpack.c.l.b16 %v644
    %v684 = vunpack.c.l.b16 %v645
    %v685 = vunpack.c.l.b16 %v646
    %v686 = vunpack.c.l.b16 %v647
    %v687 = vunpack.c.l.b16 %v648
    %v688 = vunpack.c.l.b16 %v649
    %v689 = vunpack.c.l.b16 %v650
    %v690 = vunpack.c.l.b16 %v651
    %v691 = vpack.c.b16 %v676, %v675
    %v692 = vpack.c.b16 %v678, %v677
    %v693 = vpack.c.b16 %v680, %v679
    %v694 = vpack.c.b16 %v682, %v681
    %v695 = vpack.c.b16 %v684, %v683
    %v696 = vpack.c.b16 %v686, %v685
    %v697 = vpack.c.b16 %v688, %v687
    %v698 = vpack.c.b16 %v690, %v689
    %707 = vmatprep.subr.bf16.mxu0 0
    %708 = vmatpush1.bf16.msra.mxu0 %v698
    %709 = vmatprep.subr.bf16.mxu0 0
    %710 = vmatpush1.bf16.msra.mxu0 %v697
    %711 = vmatprep.subr.bf16.mxu0 0
    %712 = vmatpush1.bf16.msra.mxu0 %v696
    %713 = vmatprep.subr.bf16.mxu0 0
    %714 = vmatpush1.bf16.msra.mxu0 %v695
    %715 = vmatprep.subr.bf16.mxu0 0
    %716 = vmatpush1.bf16.msra.mxu0 %v694
    %717 = vmatprep.subr.bf16.mxu0 0
    %718 = vmatpush1.bf16.msra.mxu0 %v693
    %719 = vmatprep.subr.bf16.mxu0 0
    %720 = vmatpush1.bf16.msra.mxu0 %v692
    %721 = vmatprep.subr.bf16.mxu0 0
    %722 = vmatpush1.bf16.msra.mxu0 %v691
    %723 = vmatprep.subr.bf16.mxu0 0
    %724 = vmatpush2.bf16.msra.mxu0 0
    %725 = vmatprep.subr.bf16.mxu0 0
    %726 = vmatpush2.bf16.msra.mxu0 0
    %727 = vmatprep.subr.bf16.mxu0 0
    %728 = vmatpush2.bf16.msra.mxu0 0
    %729 = vmatprep.subr.bf16.mxu0 0
    %730 = vmatpush2.bf16.msra.mxu0 0
    %731 = vmatprep.subr.bf16.mxu0 0
    %732 = vmatpush2.bf16.msra.mxu0 0
    %733 = vmatprep.subr.bf16.mxu0 0
    %734 = vmatpush2.bf16.msra.mxu0 0
    %735 = vmatprep.subr.bf16.mxu0 0
    %736 = vmatpush2.bf16.msra.mxu0 0
    %737 = vmatprep.subr.bf16.mxu0 0
    %738 = vmatpush2.bf16.msra.mxu0 0
    %739 = vmatprep.mubr.bf16.mxu0 0
    %740 = vmatmul.mubr.bf16.gmra.mxu0 %v635
    %v741 = vpop.f32.mrf.mxu0
    %v742 = vadd.f32 %v657, %v741
    %v743 = vpop.f32.mrf.mxu0
    %v744 = vpop.f32.mrf.mxu0
    %v745 = vpop.f32.mrf.mxu0
    %746 = vdwg.mxu0
    %747 = vst [vmem:[#allocation2] sm:$0x3] %v742
    // Predicated region
    $region30: #{net_forward.5} parent=1 // pred_check
      _
    $region31: #{net_forward.5} parent=1 // pred_check_branch
      %749 = sbr.rel (0) target = $region33
    $region32: #{net_forward.5} parent=1 // pred_region
      %s751 = ssub.s32 32, 32
      %752 = vsyncadd [#allocation3], %s751
      %s754 = sshll.u32 [#allocation2], 4
      %s755 = int_to_ptr.vmem [resolvable:$true] %s754
      %757 = dma.vmem_to_hbm [thread:$0]  %s755, 32, %s7, [#allocation3]
    $region33: #{net_forward.5} parent=1 // pred_fallthru
      _
    // Predicated region
    $region34: #{net_forward.5} parent=1 // pred_check
      _
    $region35: #{net_forward.5} parent=1 // pred_check_branch
      %759 = sbr.rel (0) target = $region37
    $region36: #{net_forward.5} parent=1 // pred_region
      %760 = dma.done [#allocation3], 32
    $region37: #{net_forward.5} parent=1 // pred_fallthru
      _
    %761 = vsyncpa [#allocation3], 1

</llo_original>
